<compile_context>
chip_gen: v6e
topology: v6e:2x2x1
jax: 0.10.0
libtpu: 0.0.40
codegen_flags: <defaults>
</compile_context>

<pallas_src>
import math
from functools import partial

import jax
import jax.numpy as jnp
from jax.experimental import pallas as pl
from jax.experimental.pallas import tpu as pltpu

PAD = 0

# Raised scoped-VMEM limit (defaults: 16 MiB v5e / 32 MiB v6e / 32 MiB v7x);
# 48 MiB stays below v7x's 64 MiB physical VMEM.
_VMEM_LIMIT = 48 * 1024 * 1024


def _tile(n, target):
    """Full extent when small, else `target` (a multiple of 8).  pl.cdiv pads the
    ragged tail: OOB rows are padded reads / dropped writes (no exact divisibility
    requirement)."""
    return n if n <= target else target


# --------------------------- kernel 1: fused QKV ----------------------------

def _qkv_proj_kernel(x_ref, w_ref, b_ref, q_ref, k_ref, v_ref, *, d_model):
    # One MXU matmul with N = 3*D; the Q columns of W/b already carry 1/sqrt(d_k).
    qkv = jnp.dot(x_ref[...], w_ref[...],
                  preferred_element_type=jnp.float32) + b_ref[...]
    q_ref[...] = qkv[:, :d_model]
    k_ref[...] = qkv[:, d_model:2 * d_model]
    v_ref[...] = qkv[:, 2 * d_model:]


def qkv_project(x2d, w_qkv, b_qkv):
    M, D = x2d.shape
    D3 = w_qkv.shape[1]
    tm = _tile(M, 512)
    out = jax.ShapeDtypeStruct((M, D), jnp.float32)
    return pl.pallas_call(
        partial(_qkv_proj_kernel, d_model=D),
        out_shape=(out, out, out),
        grid=(pl.cdiv(M, tm),),
        in_specs=[
            pl.BlockSpec((tm, D), lambda i: (i, 0)),
            pl.BlockSpec((D, D3), lambda i: (0, 0)),   # weight resident
            pl.BlockSpec((1, D3), lambda i: (0, 0)),   # bias resident
        ],
        out_specs=(
            pl.BlockSpec((tm, D), lambda i: (i, 0)),
            pl.BlockSpec((tm, D), lambda i: (i, 0)),
            pl.BlockSpec((tm, D), lambda i: (i, 0)),
        ),
        compiler_params=pltpu.CompilerParams(
            dimension_semantics=("parallel",), vmem_limit_bytes=_VMEM_LIMIT),
    )(x2d, w_qkv, b_qkv.reshape(1, D3))


# ----------------- kernel 2: attention + LN1 + FFN + LN2 --------------------

def _attn_ffn_kernel(q_ref, k_ref, v_ref, x_ref, pad_ref,
                     wc_ref, bc_ref, ln1g_ref, ln1b_ref,
                     w1_ref, b1_ref, w2_ref, b2_ref, ln2g_ref, ln2b_ref,
                     y_ref, attn_ref, cat_ref, *, n_head, d_k):
    q = q_ref[0]                       # (H, tq, d_k)  (Q already scaled by 1/sqrt(d_k))
    k = k_ref[0]                       # (H, S,  d_k)
    v = v_ref[0]                       # (H, S,  d_k)
    x = x_ref[0]                       # (tq, D) residual input (embedding rows)
    key_pad = pad_ref[0] > 0.0         # (1, S): True where the key position is PAD

    # score = q @ k^T (scale folded into the Q projection), masked_fill(mask, -1e9).
    score = jnp.einsum('hqd,hkd->hqk', q, k, preferred_element_type=jnp.float32)
    score = jnp.where(key_pad, jnp.float32(-1000000000.0), score)

    # softmax is only the returned attention map (reference quirk); exact division.
    s_max = jnp.max(score, axis=-1, keepdims=True)
    e = jnp.exp(score - s_max)
    attn_ref[0] = e / jnp.sum(e, axis=-1, keepdims=True)

    # reference quirk: out = (masked) score @ v, NOT softmax @ v
    out_h = jnp.einsum('hqk,hkd->hqd', score, v, preferred_element_type=jnp.float32)

    # MultiHeadAttention.concat == lane-concatenation of the heads.  Build it in a
    # VMEM scratch, then ONE (tq,D)@(D,D) matmul with w_concat (full-K MXU use).
    for h in range(n_head):
        cat_ref[:, h * d_k:(h + 1) * d_k] = out_h[h]
    proj = jnp.dot(cat_ref[...], wc_ref[...],
                   preferred_element_type=jnp.float32) + bc_ref[...]

    # dropout(p=0) -> identity; residual + LayerNorm1.  Two-pass variance here:
    # y1 carries ~1e9-scale masked-score values, E[y^2]-mu^2 would cancel badly.
    y1 = proj + x
    mu1 = jnp.mean(y1, axis=-1, keepdims=True)
    var1 = jnp.mean((y1 - mu1) ** 2, axis=-1, keepdims=True)
    y1 = (y1 - mu1) * jax.lax.rsqrt(var1 + 1e-5) * ln1g_ref[...] + ln1b_ref[...]

    # FFN + residual + LayerNorm2 (inputs are O(1) here -> fused moments are safe).
    h1 = jnp.dot(y1, w1_ref[...], preferred_element_type=jnp.float32) + b1_ref[...]
    h1 = jnp.maximum(h1, 0.0)
    f = jnp.dot(h1, w2_ref[...], preferred_element_type=jnp.float32) + b2_ref[...]
    y2 = f + y1
    mu2 = jnp.mean(y2, axis=-1, keepdims=True)
    var2 = jnp.mean(y2 * y2, axis=-1, keepdims=True) - mu2 * mu2
    y_ref[0] = (y2 - mu2) * jax.lax.rsqrt(var2 + 1e-5) * ln2g_ref[...] + ln2b_ref[...]


def attention_ffn_block(q, k, v, x, pad_row, p, n_head):
    B, S, D = x.shape
    d_k = D // n_head
    F = p["ffn_w1"].shape[1]
    tq = _tile(S, 256)
    kernel = partial(_attn_ffn_kernel, n_head=n_head, d_k=d_k)
    return pl.pallas_call(
        kernel,
        out_shape=(jax.ShapeDtypeStruct((B, S, D), jnp.float32),
                   jax.ShapeDtypeStruct((B, n_head, S, S), jnp.float32)),
        grid=(B, pl.cdiv(S, tq)),
        in_specs=[
            pl.BlockSpec((1, n_head, tq, d_k), lambda b, i: (b, 0, i, 0)),  # q tile
            pl.BlockSpec((1, n_head, S, d_k), lambda b, i: (b, 0, 0, 0)),   # k
            pl.BlockSpec((1, n_head, S, d_k), lambda b, i: (b, 0, 0, 0)),   # v
            pl.BlockSpec((1, tq, D), lambda b, i: (b, i, 0)),               # residual x
            pl.BlockSpec((1, 1, S), lambda b, i: (b, 0, 0)),                # key pad row
            pl.BlockSpec((D, D), lambda b, i: (0, 0)),                      # w_concat
            pl.BlockSpec((1, D), lambda b, i: (0, 0)),                      # b_concat
            pl.BlockSpec((1, D), lambda b, i: (0, 0)),                      # norm1 gamma
            pl.BlockSpec((1, D), lambda b, i: (0, 0)),                      # norm1 beta
            pl.BlockSpec((D, F), lambda b, i: (0, 0)),                      # ffn W1
            pl.BlockSpec((1, F), lambda b, i: (0, 0)),                      # ffn b1
            pl.BlockSpec((F, D), lambda b, i: (0, 0)),                      # ffn W2
            pl.BlockSpec((1, D), lambda b, i: (0, 0)),                      # ffn b2
            pl.BlockSpec((1, D), lambda b, i: (0, 0)),                      # norm2 gamma
            pl.BlockSpec((1, D), lambda b, i: (0, 0)),                      # norm2 beta
        ],
        out_specs=(
            pl.BlockSpec((1, tq, D), lambda b, i: (b, i, 0)),
            pl.BlockSpec((1, n_head, tq, S), lambda b, i: (b, 0, i, 0)),
        ),
        scratch_shapes=[pltpu.VMEM((tq, D), jnp.float32)],
        compiler_params=pltpu.CompilerParams(
            dimension_semantics=("parallel", "parallel"),
            vmem_limit_bytes=_VMEM_LIMIT),
    )(q, k, v, x, pad_row,
      p["w_concat"], p["b_concat"].reshape(1, D),
      p["norm1_g"].reshape(1, D), p["norm1_b"].reshape(1, D),
      p["ffn_w1"], p["ffn_b1"].reshape(1, F),
      p["ffn_w2"], p["ffn_b2"].reshape(1, D),
      p["norm2_g"].reshape(1, D), p["norm2_b"].reshape(1, D))


# ----------------------------- model glue (plain JAX) -----------------------

def pad_key_row(ids):
    # get_attn_pad_mask only depends on the key positions -> ship a (B, 1, S) row
    # and broadcast it to (S, S) inside the kernel instead of a dense f32 mask.
    return (ids == PAD).astype(jnp.float32)[:, None, :]


def positional_encoding(max_len, d_model):
    pos = jnp.arange(max_len, dtype=jnp.float32)[:, None]
    _2i = jnp.arange(0, d_model, 2, dtype=jnp.float32)
    ang = pos / jnp.power(10000.0, _2i / d_model)
    enc = jnp.zeros((max_len, d_model), jnp.float32)
    enc = enc.at[:, 0::2].set(jnp.sin(ang))
    enc = enc.at[:, 1::2].set(jnp.cos(ang))
    return enc


def encoder_layer(p, x, pad_row, n_head):
    B, S, D = x.shape
    d_k = D // n_head
    q2, k2, v2 = qkv_project(x.reshape(B * S, D), p["w_qkv"], p["b_qkv"])
    # MultiHeadAttention.split is a plain .view(B, H, S, d_k): the flat layout is
    # unchanged, so these reshapes are free bitcasts (no HBM data movement).
    q = q2.reshape(B, n_head, S, d_k)
    k = k2.reshape(B, n_head, S, d_k)
    v = v2.reshape(B, n_head, S, d_k)
    return attention_ffn_block(q, k, v, x, pad_row, p, n_head)


def encoder_forward(params, ids, n_head):
    B, S = ids.shape
    # TODO(synk): token-embedding gather + positional table stay in plain JAX
    # (gather glue; no Pallas win at these sizes).
    emb = params["emb"][ids] + params["pos_enc"][:S, :]
    pad_row = pad_key_row(ids)
    enc_self_attns = []
    enc_out = emb
    # Reproduces the reference Encoder.forward exactly: every layer receives
    # the *embedding* output, not the previous layer's output.
    for lp in params["layers"]:
        enc_out, attn = encoder_layer(lp, emb, pad_row, n_head)
        enc_self_attns.append(attn)
    return enc_out, enc_self_attns


# ----------------------------- deterministic init ---------------------------

def init_params(key, vocab_size, max_len, d_model, ffn_hidden, n_head, n_layers):
    d_k = d_model // n_head
    q_scale = 1.0 / math.sqrt(d_k)   # folded into the Q projection (perf feedback)
    keys = jax.random.split(key, 1 + n_layers)
    params = {
        "emb": jax.random.normal(keys[0], (vocab_size, d_model), jnp.float32) * 0.1,
        "pos_enc": positional_encoding(max_len, d_model),
        "layers": [],
    }
    for i in range(n_layers):
        ks = jax.random.split(keys[1 + i], 12)
        w_q = jax.random.normal(ks[0], (d_model, d_model), jnp.float32) * 0.1
        w_k = jax.random.normal(ks[1], (d_model, d_model), jnp.float32) * 0.1
        w_v = jax.random.normal(ks[2], (d_model, d_model), jnp.float32) * 0.1
        b_q = jax.random.normal(ks[3], (d_model,), jnp.float32) * 0.01
        b_k = jax.random.normal(ks[4], (d_model,), jnp.float32) * 0.01
        b_v = jax.random.normal(ks[5], (d_model,), jnp.float32) * 0.01
        params["layers"].append({
            # fused Q|K|V projection (pre-transposed Linear weights);
            # 1/sqrt(d_k) folded into the Q columns and Q bias.
            "w_qkv": jnp.concatenate([w_q * q_scale, w_k, w_v], axis=1),
            "b_qkv": jnp.concatenate([b_q * q_scale, b_k, b_v]),
            "w_concat": jax.random.normal(ks[6], (d_model, d_model), jnp.float32) * 0.1,
            "b_concat": jax.random.normal(ks[7], (d_model,), jnp.float32) * 0.01,
            "ffn_w1": jax.random.normal(ks[8], (d_model, ffn_hidden), jnp.float32) * 0.1,
            "ffn_b1": jax.random.normal(ks[9], (ffn_hidden,), jnp.float32) * 0.01,
            "ffn_w2": jax.random.normal(ks[10], (ffn_hidden, d_model), jnp.float32) * 0.1,
            "ffn_b2": jax.random.normal(ks[11], (d_model,), jnp.float32) * 0.01,
            "norm1_g": jnp.ones((d_model,), jnp.float32),
            "norm1_b": jnp.zeros((d_model,), jnp.float32),
            "norm2_g": jnp.ones((d_model,), jnp.float32),
            "norm2_b": jnp.zeros((d_model,), jnp.float32),
        })
    return params


# ----------------------------- demo -----------------------------------------

if __name__ == "__main__":
    B, S, d_model, n_head, ffn_hidden, n_layers = 2, 8, 32, 4, 64, 2
    vocab, max_len = 50, 64

    key = jax.random.PRNGKey(0)
    k_p, k_ids = jax.random.split(key)
    params = init_params(k_p, vocab, max_len, d_model, ffn_hidden, n_head, n_layers)
    ids = jax.random.randint(k_ids, (B, S), 0, vocab, dtype=jnp.int32)

    fwd = jax.jit(partial(encoder_forward, n_head=n_head))
    enc_out, enc_self_attns = fwd(params, ids)
    jax.block_until_ready(enc_out)

    assert enc_out.shape == (B, S, d_model)
    assert len(enc_self_attns) == n_layers
    assert all(a.shape == (B, n_head, S, S) for a in enc_self_attns)
    assert bool(jnp.all(jnp.isfinite(enc_out)))
    print("KERNEL_OK")
</pallas_src>

<mosaic_0001>
module attributes {stable_mosaic.version = 11 : i64} {
  func.func @_attn_ffn_kernel(%arg0: i32, %arg1: i32, %arg2: memref<1x4x8x8xf32, #tpu.memory_space<vmem>>, %arg3: memref<1x4x8x8xf32, #tpu.memory_space<vmem>>, %arg4: memref<1x4x8x8xf32, #tpu.memory_space<vmem>>, %arg5: memref<1x8x32xf32, #tpu.memory_space<vmem>>, %arg6: memref<1x1x8xf32, #tpu.memory_space<vmem>>, %arg7: memref<32x32xf32, #tpu.memory_space<vmem>>, %arg8: memref<1x32xf32, #tpu.memory_space<vmem>>, %arg9: memref<1x32xf32, #tpu.memory_space<vmem>>, %arg10: memref<1x32xf32, #tpu.memory_space<vmem>>, %arg11: memref<32x64xf32, #tpu.memory_space<vmem>>, %arg12: memref<1x64xf32, #tpu.memory_space<vmem>>, %arg13: memref<64x32xf32, #tpu.memory_space<vmem>>, %arg14: memref<1x32xf32, #tpu.memory_space<vmem>>, %arg15: memref<1x32xf32, #tpu.memory_space<vmem>>, %arg16: memref<1x32xf32, #tpu.memory_space<vmem>>, %arg17: memref<1x8x32xf32, #tpu.memory_space<vmem>>, %arg18: memref<1x4x8x8xf32, #tpu.memory_space<vmem>>, %arg19: memref<8x32xf32, #tpu.memory_space<vmem>>) attributes {dimension_semantics = [#tpu.dimension_semantics<parallel>, #tpu.dimension_semantics<parallel>], iteration_bounds = array<i64: 2, 1>, scalar_prefetch = 0 : i64, scratch_operands = 1 : i64, tpu.core_type = #tpu.core_type<tc>, window_params = [{transform_indices = @transform_0, window_bounds = array<i64: 1, 4, 8, 8>}, {transform_indices = @transform_1, window_bounds = array<i64: 1, 4, 8, 8>}, {transform_indices = @transform_2, window_bounds = array<i64: 1, 4, 8, 8>}, {transform_indices = @transform_3, window_bounds = array<i64: 1, 8, 32>}, {transform_indices = @transform_4, window_bounds = array<i64: 1, 1, 8>}, {pipeline_mode = #tpu.pipeline_mode<synchronous>, transform_indices = @transform_5, window_bounds = array<i64: 32, 32>}, {pipeline_mode = #tpu.pipeline_mode<synchronous>, transform_indices = @transform_6, window_bounds = array<i64: 1, 32>}, {pipeline_mode = #tpu.pipeline_mode<synchronous>, transform_indices = @transform_7, window_bounds = array<i64: 1, 32>}, {pipeline_mode = #tpu.pipeline_mode<synchronous>, transform_indices = @transform_8, window_bounds = array<i64: 1, 32>}, {pipeline_mode = #tpu.pipeline_mode<synchronous>, transform_indices = @transform_9, window_bounds = array<i64: 32, 64>}, {pipeline_mode = #tpu.pipeline_mode<synchronous>, transform_indices = @transform_10, window_bounds = array<i64: 1, 64>}, {pipeline_mode = #tpu.pipeline_mode<synchronous>, transform_indices = @transform_11, window_bounds = array<i64: 64, 32>}, {pipeline_mode = #tpu.pipeline_mode<synchronous>, transform_indices = @transform_12, window_bounds = array<i64: 1, 32>}, {pipeline_mode = #tpu.pipeline_mode<synchronous>, transform_indices = @transform_13, window_bounds = array<i64: 1, 32>}, {pipeline_mode = #tpu.pipeline_mode<synchronous>, transform_indices = @transform_14, window_bounds = array<i64: 1, 32>}, {transform_indices = @transform_15, window_bounds = array<i64: 1, 8, 32>}, {transform_indices = @transform_16, window_bounds = array<i64: 1, 4, 8, 8>}]} {
    %c0 = arith.constant 0 : index
    %c0_0 = arith.constant 0 : index
    %c0_1 = arith.constant 0 : index
    %c0_2 = arith.constant 0 : index
    %0 = vector.load %arg2[%c0, %c0_0, %c0_1, %c0_2] : memref<1x4x8x8xf32, #tpu.memory_space<vmem>>, vector<1x4x8x8xf32>
    %1 = vector.shape_cast %0 : vector<1x4x8x8xf32> to vector<4x8x8xf32>
    %c0_3 = arith.constant 0 : index
    %c0_4 = arith.constant 0 : index
    %c0_5 = arith.constant 0 : index
    %c0_6 = arith.constant 0 : index
    %2 = vector.load %arg3[%c0_3, %c0_4, %c0_5, %c0_6] : memref<1x4x8x8xf32, #tpu.memory_space<vmem>>, vector<1x4x8x8xf32>
    %3 = vector.shape_cast %2 : vector<1x4x8x8xf32> to vector<4x8x8xf32>
    %c0_7 = arith.constant 0 : index
    %c0_8 = arith.constant 0 : index
    %c0_9 = arith.constant 0 : index
    %c0_10 = arith.constant 0 : index
    %4 = vector.load %arg4[%c0_7, %c0_8, %c0_9, %c0_10] : memref<1x4x8x8xf32, #tpu.memory_space<vmem>>, vector<1x4x8x8xf32>
    %5 = vector.shape_cast %4 : vector<1x4x8x8xf32> to vector<4x8x8xf32>
    %c0_11 = arith.constant 0 : index
    %c0_12 = arith.constant 0 : index
    %c0_13 = arith.constant 0 : index
    %6 = vector.load %arg5[%c0_11, %c0_12, %c0_13] : memref<1x8x32xf32, #tpu.memory_space<vmem>>, vector<1x8x32xf32>
    %7 = vector.shape_cast %6 : vector<1x8x32xf32> to vector<8x32xf32>
    %c0_14 = arith.constant 0 : index
    %c0_15 = arith.constant 0 : index
    %c0_16 = arith.constant 0 : index
    %8 = vector.load %arg6[%c0_14, %c0_15, %c0_16] : memref<1x1x8xf32, #tpu.memory_space<vmem>>, vector<1x1x8xf32>
    %9 = vector.shape_cast %8 : vector<1x1x8xf32> to vector<1x8xf32>
    %cst = arith.constant 0.000000e+00 : f32
    %10 = vector.broadcast %cst : f32 to vector<1x8xf32>
    %11 = arith.cmpf ogt, %9, %10 : vector<1x8xf32>
    "tpu.trace_start"() <{level = 10 : i32, message = "hqd,hkd->hqk"}> : () -> ()
    %cst_17 = arith.constant dense<0.000000e+00> : vector<4x8x8xf32>
    %12 = tpu.matmul %1, %3, %cst_17 {dimension_numbers = #tpu.dot_dimension_numbers<[2], [2], [1], [1], [0, 0, 0, 1, 1, 1], [0], [0]>} : vector<4x8x8xf32>, vector<4x8x8xf32>, vector<4x8x8xf32> -> vector<4x8x8xf32>
    %cst_18 = arith.constant -1.000000e+09 : f32
    "tpu.trace_stop"() : () -> ()
    %13 = vector.shape_cast %11 : vector<1x8xi1> to vector<1x1x8xi1>
    %14 = vector.broadcast %13 : vector<1x1x8xi1> to vector<4x8x8xi1>
    %15 = vector.broadcast %cst_18 : f32 to vector<4x8x8xf32>
    %16 = arith.select %14, %15, %12 : vector<4x8x8xi1>, vector<4x8x8xf32>
    %cst_19 = arith.constant dense<0xFF800000> : vector<4x8xf32>
    %17 = vector.multi_reduction <maximumf>, %16, %cst_19 [2] : vector<4x8x8xf32> to vector<4x8xf32>
    %18 = vector.shape_cast %17 : vector<4x8xf32> to vector<4x8x1xf32>
    %19 = vector.broadcast %18 : vector<4x8x1xf32> to vector<4x8x8xf32>
    %20 = arith.subf %16, %19 : vector<4x8x8xf32>
    %21 = math.exp %20 : vector<4x8x8xf32>
    %cst_20 = arith.constant dense<0.000000e+00> : vector<4x8xf32>
    %22 = vector.multi_reduction <add>, %21, %cst_20 [2] : vector<4x8x8xf32> to vector<4x8xf32>
    %23 = vector.shape_cast %22 : vector<4x8xf32> to vector<4x8x1xf32>
    %24 = vector.broadcast %23 : vector<4x8x1xf32> to vector<4x8x8xf32>
    %25 = arith.divf %21, %24 : vector<4x8x8xf32>
    %c0_21 = arith.constant 0 : index
    %c0_22 = arith.constant 0 : index
    %c0_23 = arith.constant 0 : index
    %c0_24 = arith.constant 0 : index
    %26 = vector.load %arg18[%c0_21, %c0_22, %c0_23, %c0_24] : memref<1x4x8x8xf32, #tpu.memory_space<vmem>>, vector<1x4x8x8xf32>
    %27 = vector.shape_cast %26 : vector<1x4x8x8xf32> to vector<4x8x8xf32>
    %28 = vector.shape_cast %25 : vector<4x8x8xf32> to vector<1x4x8x8xf32>
    tpu.vector_store %arg18[%c0_21, %c0_22, %c0_23, %c0_24], %28 {strides = array<i32>} : memref<1x4x8x8xf32, #tpu.memory_space<vmem>>, vector<1x4x8x8xf32>,
    "tpu.trace_start"() <{level = 10 : i32, message = "hqk,hkd->hqd"}> : () -> ()
    %cst_25 = arith.constant dense<0.000000e+00> : vector<4x8x8xf32>
    %29 = tpu.matmul %16, %5, %cst_25 {dimension_numbers = #tpu.dot_dimension_numbers<[2], [1], [1], [2], [0, 0, 0, 1, 1, 2], [0], [0]>} : vector<4x8x8xf32>, vector<4x8x8xf32>, vector<4x8x8xf32> -> vector<4x8x8xf32>
    "tpu.trace_stop"() : () -> ()
    %30 = vector.extract_strided_slice %29 {offsets = [0, 0, 0], sizes = [1, 8, 8], strides = [1, 1, 1]} : vector<4x8x8xf32> to vector<1x8x8xf32>
    %31 = vector.shape_cast %30 : vector<1x8x8xf32> to vector<8x8xf32>
    %c0_26 = arith.constant 0 : index
    %c0_27 = arith.constant 0 : index
    %32 = vector.load %arg19[%c0_26, %c0_27] : memref<8x32xf32, #tpu.memory_space<vmem>>, vector<8x8xf32>
    tpu.vector_store %arg19[%c0_26, %c0_27], %31 {strides = array<i32>} : memref<8x32xf32, #tpu.memory_space<vmem>>, vector<8x8xf32>,
    %33 = vector.extract_strided_slice %29 {offsets = [1, 0, 0], sizes = [1, 8, 8], strides = [1, 1, 1]} : vector<4x8x8xf32> to vector<1x8x8xf32>
    %34 = vector.shape_cast %33 : vector<1x8x8xf32> to vector<8x8xf32>
    %c0_28 = arith.constant 0 : index
    %c8 = arith.constant 8 : index
    %35 = vector.load %arg19[%c0_28, %c8] : memref<8x32xf32, #tpu.memory_space<vmem>>, vector<8x8xf32>
    tpu.vector_store %arg19[%c0_28, %c8], %34 {strides = array<i32>} : memref<8x32xf32, #tpu.memory_space<vmem>>, vector<8x8xf32>,
    %36 = vector.extract_strided_slice %29 {offsets = [2, 0, 0], sizes = [1, 8, 8], strides = [1, 1, 1]} : vector<4x8x8xf32> to vector<1x8x8xf32>
    %37 = vector.shape_cast %36 : vector<1x8x8xf32> to vector<8x8xf32>
    %c0_29 = arith.constant 0 : index
    %c16 = arith.constant 16 : index
    %38 = vector.load %arg19[%c0_29, %c16] : memref<8x32xf32, #tpu.memory_space<vmem>>, vector<8x8xf32>
    tpu.vector_store %arg19[%c0_29, %c16], %37 {strides = array<i32>} : memref<8x32xf32, #tpu.memory_space<vmem>>, vector<8x8xf32>,
    %39 = vector.extract_strided_slice %29 {offsets = [3, 0, 0], sizes = [1, 8, 8], strides = [1, 1, 1]} : vector<4x8x8xf32> to vector<1x8x8xf32>
    %40 = vector.shape_cast %39 : vector<1x8x8xf32> to vector<8x8xf32>
    %c0_30 = arith.constant 0 : index
    %c24 = arith.constant 24 : index
    %41 = vector.load %arg19[%c0_30, %c24] : memref<8x32xf32, #tpu.memory_space<vmem>>, vector<8x8xf32>
    tpu.vector_store %arg19[%c0_30, %c24], %40 {strides = array<i32>} : memref<8x32xf32, #tpu.memory_space<vmem>>, vector<8x8xf32>,
    %c0_31 = arith.constant 0 : index
    %c0_32 = arith.constant 0 : index
    %42 = vector.load %arg19[%c0_31, %c0_32] : memref<8x32xf32, #tpu.memory_space<vmem>>, vector<8x32xf32>
    %c0_33 = arith.constant 0 : index
    %c0_34 = arith.constant 0 : index
    %43 = vector.load %arg7[%c0_33, %c0_34] : memref<32x32xf32, #tpu.memory_space<vmem>>, vector<32x32xf32>
    %cst_35 = arith.constant dense<0.000000e+00> : vector<8x32xf32>
    %44 = tpu.matmul %42, %43, %cst_35 {dimension_numbers = #tpu.dot_dimension_numbers<[1], [0], [0], [1], [0, 0, 1, 1], [], []>} : vector<8x32xf32>, vector<32x32xf32>, vector<8x32xf32> -> vector<8x32xf32>
    %c0_36 = arith.constant 0 : index
    %c0_37 = arith.constant 0 : index
    %45 = vector.load %arg8[%c0_36, %c0_37] : memref<1x32xf32, #tpu.memory_space<vmem>>, vector<1x32xf32>
    %46 = vector.broadcast %45 : vector<1x32xf32> to vector<8x32xf32>
    %47 = arith.addf %44, %46 : vector<8x32xf32>
    %48 = arith.addf %47, %7 : vector<8x32xf32>
    %cst_38 = arith.constant dense<0.000000e+00> : vector<8xf32>
    %49 = vector.multi_reduction <add>, %48, %cst_38 [1] : vector<8x32xf32> to vector<8xf32>
    %50 = vector.shape_cast %49 : vector<8xf32> to vector<8x1xf32>
    %cst_39 = arith.constant 3.200000e+01 : f32
    %51 = vector.broadcast %cst_39 : f32 to vector<8x1xf32>
    %52 = arith.divf %50, %51 : vector<8x1xf32>
    %53 = vector.broadcast %52 : vector<8x1xf32> to vector<8x32xf32>
    %54 = arith.subf %48, %53 : vector<8x32xf32>
    %55 = arith.mulf %54, %54 : vector<8x32xf32>
    %cst_40 = arith.constant dense<0.000000e+00> : vector<8xf32>
    %56 = vector.multi_reduction <add>, %55, %cst_40 [1] : vector<8x32xf32> to vector<8xf32>
    %57 = vector.shape_cast %56 : vector<8xf32> to vector<8x1xf32>
    %cst_41 = arith.constant 3.200000e+01 : f32
    %58 = vector.broadcast %cst_41 : f32 to vector<8x1xf32>
    %59 = arith.divf %57, %58 : vector<8x1xf32>
    %60 = vector.broadcast %52 : vector<8x1xf32> to vector<8x32xf32>
    %61 = arith.subf %48, %60 : vector<8x32xf32>
    %cst_42 = arith.constant 9.99999974E-6 : f32
    %62 = vector.broadcast %cst_42 : f32 to vector<8x1xf32>
    %63 = arith.addf %59, %62 : vector<8x1xf32>
    %64 = math.rsqrt %63 : vector<8x1xf32>
    %65 = vector.broadcast %64 : vector<8x1xf32> to vector<8x32xf32>
    %66 = arith.mulf %61, %65 : vector<8x32xf32>
    %c0_43 = arith.constant 0 : index
    %c0_44 = arith.constant 0 : index
    %67 = vector.load %arg9[%c0_43, %c0_44] : memref<1x32xf32, #tpu.memory_space<vmem>>, vector<1x32xf32>
    %68 = vector.broadcast %67 : vector<1x32xf32> to vector<8x32xf32>
    %69 = arith.mulf %66, %68 : vector<8x32xf32>
    %c0_45 = arith.constant 0 : index
    %c0_46 = arith.constant 0 : index
    %70 = vector.load %arg10[%c0_45, %c0_46] : memref<1x32xf32, #tpu.memory_space<vmem>>, vector<1x32xf32>
    %71 = vector.broadcast %70 : vector<1x32xf32> to vector<8x32xf32>
    %72 = arith.addf %69, %71 : vector<8x32xf32>
    %c0_47 = arith.constant 0 : index
    %c0_48 = arith.constant 0 : index
    %73 = vector.load %arg11[%c0_47, %c0_48] : memref<32x64xf32, #tpu.memory_space<vmem>>, vector<32x64xf32>
    %cst_49 = arith.constant dense<0.000000e+00> : vector<8x64xf32>
    %74 = tpu.matmul %72, %73, %cst_49 {dimension_numbers = #tpu.dot_dimension_numbers<[1], [0], [0], [1], [0, 0, 1, 1], [], []>} : vector<8x32xf32>, vector<32x64xf32>, vector<8x64xf32> -> vector<8x64xf32>
    %c0_50 = arith.constant 0 : index
    %c0_51 = arith.constant 0 : index
    %75 = vector.load %arg12[%c0_50, %c0_51] : memref<1x64xf32, #tpu.memory_space<vmem>>, vector<1x64xf32>
    %76 = vector.broadcast %75 : vector<1x64xf32> to vector<8x64xf32>
    %77 = arith.addf %74, %76 : vector<8x64xf32>
    %cst_52 = arith.constant 0.000000e+00 : f32
    %78 = vector.broadcast %cst_52 : f32 to vector<8x64xf32>
    %79 = arith.maximumf %77, %78 : vector<8x64xf32>
    %c0_53 = arith.constant 0 : index
    %c0_54 = arith.constant 0 : index
    %80 = vector.load %arg13[%c0_53, %c0_54] : memref<64x32xf32, #tpu.memory_space<vmem>>, vector<64x32xf32>
    %cst_55 = arith.constant dense<0.000000e+00> : vector<8x32xf32>
    %81 = tpu.matmul %79, %80, %cst_55 {dimension_numbers = #tpu.dot_dimension_numbers<[1], [0], [0], [1], [0, 0, 1, 1], [], []>} : vector<8x64xf32>, vector<64x32xf32>, vector<8x32xf32> -> vector<8x32xf32>
    %c0_56 = arith.constant 0 : index
    %c0_57 = arith.constant 0 : index
    %82 = vector.load %arg14[%c0_56, %c0_57] : memref<1x32xf32, #tpu.memory_space<vmem>>, vector<1x32xf32>
    %83 = vector.broadcast %82 : vector<1x32xf32> to vector<8x32xf32>
    %84 = arith.addf %81, %83 : vector<8x32xf32>
    %85 = arith.addf %84, %72 : vector<8x32xf32>
    %cst_58 = arith.constant dense<0.000000e+00> : vector<8xf32>
    %86 = vector.multi_reduction <add>, %85, %cst_58 [1] : vector<8x32xf32> to vector<8xf32>
    %87 = vector.shape_cast %86 : vector<8xf32> to vector<8x1xf32>
    %cst_59 = arith.constant 3.200000e+01 : f32
    %88 = vector.broadcast %cst_59 : f32 to vector<8x1xf32>
    %89 = arith.divf %87, %88 : vector<8x1xf32>
    %90 = arith.mulf %85, %85 : vector<8x32xf32>
    %cst_60 = arith.constant dense<0.000000e+00> : vector<8xf32>
    %91 = vector.multi_reduction <add>, %90, %cst_60 [1] : vector<8x32xf32> to vector<8xf32>
    %92 = vector.shape_cast %91 : vector<8xf32> to vector<8x1xf32>
    %cst_61 = arith.constant 3.200000e+01 : f32
    %93 = vector.broadcast %cst_61 : f32 to vector<8x1xf32>
    %94 = arith.divf %92, %93 : vector<8x1xf32>
    %95 = arith.mulf %89, %89 : vector<8x1xf32>
    %96 = arith.subf %94, %95 : vector<8x1xf32>
    %97 = vector.broadcast %89 : vector<8x1xf32> to vector<8x32xf32>
    %98 = arith.subf %85, %97 : vector<8x32xf32>
    %cst_62 = arith.constant 9.99999974E-6 : f32
    %99 = vector.broadcast %cst_62 : f32 to vector<8x1xf32>
    %100 = arith.addf %96, %99 : vector<8x1xf32>
    %101 = math.rsqrt %100 : vector<8x1xf32>
    %102 = vector.broadcast %101 : vector<8x1xf32> to vector<8x32xf32>
    %103 = arith.mulf %98, %102 : vector<8x32xf32>
    %c0_63 = arith.constant 0 : index
    %c0_64 = arith.constant 0 : index
    %104 = vector.load %arg15[%c0_63, %c0_64] : memref<1x32xf32, #tpu.memory_space<vmem>>, vector<1x32xf32>
    %105 = vector.broadcast %104 : vector<1x32xf32> to vector<8x32xf32>
    %106 = arith.mulf %103, %105 : vector<8x32xf32>
    %c0_65 = arith.constant 0 : index
    %c0_66 = arith.constant 0 : index
    %107 = vector.load %arg16[%c0_65, %c0_66] : memref<1x32xf32, #tpu.memory_space<vmem>>, vector<1x32xf32>
    %108 = vector.broadcast %107 : vector<1x32xf32> to vector<8x32xf32>
    %109 = arith.addf %106, %108 : vector<8x32xf32>
    %c0_67 = arith.constant 0 : index
    %c0_68 = arith.constant 0 : index
    %c0_69 = arith.constant 0 : index
    %110 = vector.load %arg17[%c0_67, %c0_68, %c0_69] : memref<1x8x32xf32, #tpu.memory_space<vmem>>, vector<1x8x32xf32>
    %111 = vector.shape_cast %110 : vector<1x8x32xf32> to vector<8x32xf32>
    %112 = vector.shape_cast %109 : vector<8x32xf32> to vector<1x8x32xf32>
    tpu.vector_store %arg17[%c0_67, %c0_68, %c0_69], %112 {strides = array<i32>} : memref<1x8x32xf32, #tpu.memory_space<vmem>>, vector<1x8x32xf32>,
    return
  }
  func.func @transform_0(%arg0: i32, %arg1: i32) -> (i32, i32, i32, i32) {
    %c0_i32 = arith.constant 0 : i32
    %c0_i32_0 = arith.constant 0 : i32
    %c0_i32_1 = arith.constant 0 : i32
    return %arg0, %c0_i32, %arg1, %c0_i32_0 : i32, i32, i32, i32
  }
  func.func @transform_1(%arg0: i32, %arg1: i32) -> (i32, i32, i32, i32) {
    %c0_i32 = arith.constant 0 : i32
    %c0_i32_0 = arith.constant 0 : i32
    %c0_i32_1 = arith.constant 0 : i32
    %c0_i32_2 = arith.constant 0 : i32
    return %arg0, %c0_i32, %c0_i32_0, %c0_i32_1 : i32, i32, i32, i32
  }
  func.func @transform_2(%arg0: i32, %arg1: i32) -> (i32, i32, i32, i32) {
    %c0_i32 = arith.constant 0 : i32
    %c0_i32_0 = arith.constant 0 : i32
    %c0_i32_1 = arith.constant 0 : i32
    %c0_i32_2 = arith.constant 0 : i32
    return %arg0, %c0_i32, %c0_i32_0, %c0_i32_1 : i32, i32, i32, i32
  }
  func.func @transform_3(%arg0: i32, %arg1: i32) -> (i32, i32, i32) {
    %c0_i32 = arith.constant 0 : i32
    %c0_i32_0 = arith.constant 0 : i32
    return %arg0, %arg1, %c0_i32 : i32, i32, i32
  }
  func.func @transform_4(%arg0: i32, %arg1: i32) -> (i32, i32, i32) {
    %c0_i32 = arith.constant 0 : i32
    %c0_i32_0 = arith.constant 0 : i32
    %c0_i32_1 = arith.constant 0 : i32
    return %arg0, %c0_i32, %c0_i32_0 : i32, i32, i32
  }
  func.func @transform_5(%arg0: i32, %arg1: i32) -> (i32, i32) {
    %c0_i32 = arith.constant 0 : i32
    %c0_i32_0 = arith.constant 0 : i32
    %c0_i32_1 = arith.constant 0 : i32
    return %c0_i32, %c0_i32_0 : i32, i32
  }
  func.func @transform_6(%arg0: i32, %arg1: i32) -> (i32, i32) {
    %c0_i32 = arith.constant 0 : i32
    %c0_i32_0 = arith.constant 0 : i32
    %c0_i32_1 = arith.constant 0 : i32
    return %c0_i32, %c0_i32_0 : i32, i32
  }
  func.func @transform_7(%arg0: i32, %arg1: i32) -> (i32, i32) {
    %c0_i32 = arith.constant 0 : i32
    %c0_i32_0 = arith.constant 0 : i32
    %c0_i32_1 = arith.constant 0 : i32
    return %c0_i32, %c0_i32_0 : i32, i32
  }
  func.func @transform_8(%arg0: i32, %arg1: i32) -> (i32, i32) {
    %c0_i32 = arith.constant 0 : i32
    %c0_i32_0 = arith.constant 0 : i32
    %c0_i32_1 = arith.constant 0 : i32
    return %c0_i32, %c0_i32_0 : i32, i32
  }
  func.func @transform_9(%arg0: i32, %arg1: i32) -> (i32, i32) {
    %c0_i32 = arith.constant 0 : i32
    %c0_i32_0 = arith.constant 0 : i32
    %c0_i32_1 = arith.constant 0 : i32
    return %c0_i32, %c0_i32_0 : i32, i32
  }
  func.func @transform_10(%arg0: i32, %arg1: i32) -> (i32, i32) {
    %c0_i32 = arith.constant 0 : i32
    %c0_i32_0 = arith.constant 0 : i32
    %c0_i32_1 = arith.constant 0 : i32
    return %c0_i32, %c0_i32_0 : i32, i32
  }
  func.func @transform_11(%arg0: i32, %arg1: i32) -> (i32, i32) {
    %c0_i32 = arith.constant 0 : i32
    %c0_i32_0 = arith.constant 0 : i32
    %c0_i32_1 = arith.constant 0 : i32
    return %c0_i32, %c0_i32_0 : i32, i32
  }
  func.func @transform_12(%arg0: i32, %arg1: i32) -> (i32, i32) {
    %c0_i32 = arith.constant 0 : i32
    %c0_i32_0 = arith.constant 0 : i32
    %c0_i32_1 = arith.constant 0 : i32
    return %c0_i32, %c0_i32_0 : i32, i32
  }
  func.func @transform_13(%arg0: i32, %arg1: i32) -> (i32, i32) {
    %c0_i32 = arith.constant 0 : i32
    %c0_i32_0 = arith.constant 0 : i32
    %c0_i32_1 = arith.constant 0 : i32
    return %c0_i32, %c0_i32_0 : i32, i32
  }
  func.func @transform_14(%arg0: i32, %arg1: i32) -> (i32, i32) {
    %c0_i32 = arith.constant 0 : i32
    %c0_i32_0 = arith.constant 0 : i32
    %c0_i32_1 = arith.constant 0 : i32
    return %c0_i32, %c0_i32_0 : i32, i32
  }
  func.func @transform_15(%arg0: i32, %arg1: i32) -> (i32, i32, i32) {
    %c0_i32 = arith.constant 0 : i32
    %c0_i32_0 = arith.constant 0 : i32
    return %arg0, %arg1, %c0_i32 : i32, i32, i32
  }
  func.func @transform_16(%arg0: i32, %arg1: i32) -> (i32, i32, i32, i32) {
    %c0_i32 = arith.constant 0 : i32
    %c0_i32_0 = arith.constant 0 : i32
    %c0_i32_1 = arith.constant 0 : i32
    return %arg0, %c0_i32, %arg1, %c0_i32_0 : i32, i32, i32, i32
  }
}

module attributes {stable_mosaic.version = 11 : i64} {
  func.func @_qkv_proj_kernel(%arg0: i32, %arg1: memref<16x32xf32, #tpu.memory_space<vmem>>, %arg2: memref<32x96xf32, #tpu.memory_space<vmem>>, %arg3: memref<1x96xf32, #tpu.memory_space<vmem>>, %arg4: memref<16x32xf32, #tpu.memory_space<vmem>>, %arg5: memref<16x32xf32, #tpu.memory_space<vmem>>, %arg6: memref<16x32xf32, #tpu.memory_space<vmem>>) attributes {dimension_semantics = [#tpu.dimension_semantics<parallel>], iteration_bounds = array<i64: 1>, scalar_prefetch = 0 : i64, scratch_operands = 0 : i64, tpu.core_type = #tpu.core_type<tc>, window_params = [{transform_indices = @transform_0, window_bounds = array<i64: 16, 32>}, {pipeline_mode = #tpu.pipeline_mode<synchronous>, transform_indices = @transform_1, window_bounds = array<i64: 32, 96>}, {pipeline_mode = #tpu.pipeline_mode<synchronous>, transform_indices = @transform_2, window_bounds = array<i64: 1, 96>}, {transform_indices = @transform_3, window_bounds = array<i64: 16, 32>}, {transform_indices = @transform_4, window_bounds = array<i64: 16, 32>}, {transform_indices = @transform_5, window_bounds = array<i64: 16, 32>}]} {
    %c0 = arith.constant 0 : index
    %c0_0 = arith.constant 0 : index
    %0 = vector.load %arg1[%c0, %c0_0] : memref<16x32xf32, #tpu.memory_space<vmem>>, vector<16x32xf32>
    %c0_1 = arith.constant 0 : index
    %c0_2 = arith.constant 0 : index
    %1 = vector.load %arg2[%c0_1, %c0_2] : memref<32x96xf32, #tpu.memory_space<vmem>>, vector<32x96xf32>
    %cst = arith.constant dense<0.000000e+00> : vector<16x96xf32>
    %2 = tpu.matmul %0, %1, %cst {dimension_numbers = #tpu.dot_dimension_numbers<[1], [0], [0], [1], [0, 0, 1, 1], [], []>} : vector<16x32xf32>, vector<32x96xf32>, vector<16x96xf32> -> vector<16x96xf32>
    %c0_3 = arith.constant 0 : index
    %c0_4 = arith.constant 0 : index
    %3 = vector.load %arg3[%c0_3, %c0_4] : memref<1x96xf32, #tpu.memory_space<vmem>>, vector<1x96xf32>
    %4 = vector.broadcast %3 : vector<1x96xf32> to vector<16x96xf32>
    %5 = arith.addf %2, %4 : vector<16x96xf32>
    %6 = vector.extract_strided_slice %5 {offsets = [0, 0], sizes = [16, 32], strides = [1, 1]} : vector<16x96xf32> to vector<16x32xf32>
    %c0_5 = arith.constant 0 : index
    %c0_6 = arith.constant 0 : index
    %7 = vector.load %arg4[%c0_5, %c0_6] : memref<16x32xf32, #tpu.memory_space<vmem>>, vector<16x32xf32>
    tpu.vector_store %arg4[%c0_5, %c0_6], %6 {strides = array<i32>} : memref<16x32xf32, #tpu.memory_space<vmem>>, vector<16x32xf32>,
    %8 = vector.extract_strided_slice %5 {offsets = [0, 32], sizes = [16, 32], strides = [1, 1]} : vector<16x96xf32> to vector<16x32xf32>
    %c0_7 = arith.constant 0 : index
    %c0_8 = arith.constant 0 : index
    %9 = vector.load %arg5[%c0_7, %c0_8] : memref<16x32xf32, #tpu.memory_space<vmem>>, vector<16x32xf32>
    tpu.vector_store %arg5[%c0_7, %c0_8], %8 {strides = array<i32>} : memref<16x32xf32, #tpu.memory_space<vmem>>, vector<16x32xf32>,
    %10 = vector.extract_strided_slice %5 {offsets = [0, 64], sizes = [16, 32], strides = [1, 1]} : vector<16x96xf32> to vector<16x32xf32>
    %c0_9 = arith.constant 0 : index
    %c0_10 = arith.constant 0 : index
    %11 = vector.load %arg6[%c0_9, %c0_10] : memref<16x32xf32, #tpu.memory_space<vmem>>, vector<16x32xf32>
    tpu.vector_store %arg6[%c0_9, %c0_10], %10 {strides = array<i32>} : memref<16x32xf32, #tpu.memory_space<vmem>>, vector<16x32xf32>,
    return
  }
  func.func @transform_0(%arg0: i32) -> (i32, i32) {
    %c0_i32 = arith.constant 0 : i32
    %c0_i32_0 = arith.constant 0 : i32
    return %arg0, %c0_i32 : i32, i32
  }
  func.func @transform_1(%arg0: i32) -> (i32, i32) {
    %c0_i32 = arith.constant 0 : i32
    %c0_i32_0 = arith.constant 0 : i32
    %c0_i32_1 = arith.constant 0 : i32
    return %c0_i32, %c0_i32_0 : i32, i32
  }
  func.func @transform_2(%arg0: i32) -> (i32, i32) {
    %c0_i32 = arith.constant 0 : i32
    %c0_i32_0 = arith.constant 0 : i32
    %c0_i32_1 = arith.constant 0 : i32
    return %c0_i32, %c0_i32_0 : i32, i32
  }
  func.func @transform_3(%arg0: i32) -> (i32, i32) {
    %c0_i32 = arith.constant 0 : i32
    %c0_i32_0 = arith.constant 0 : i32
    return %arg0, %c0_i32 : i32, i32
  }
  func.func @transform_4(%arg0: i32) -> (i32, i32) {
    %c0_i32 = arith.constant 0 : i32
    %c0_i32_0 = arith.constant 0 : i32
    return %arg0, %c0_i32 : i32, i32
  }
  func.func @transform_5(%arg0: i32) -> (i32, i32) {
    %c0_i32 = arith.constant 0 : i32
    %c0_i32_0 = arith.constant 0 : i32
    return %arg0, %c0_i32 : i32, i32
  }
}

</mosaic_0001>

<llo_original>
// kernel: encoder_forward.6
$region0: #{encoder_forward.6}
  #allocation0 [shape = 'u32[]', space=smem, size = 0x4, offset = 0x4, fixed_abs, tag = 'smem constant byte address 0x4 - core index']
  #allocation1 [shape = 'u32[144,128]{1,0:T(1,128)}', space=vmem, size = 0x12000, scoped, tag = 'internal scratch']
  %s0 = inlined_call_operand.vmem [shape: f32[16,32], index: 0, kind: input, shape index: {}]
  %s1 = inlined_call_operand.vmem [shape: f32[32,96], index: 1, kind: input, shape index: {}]
  %s2 = inlined_call_operand.vmem [shape: f32[1,96], index: 2, kind: input, shape index: {}]
  %s3 = inlined_call_operand.vmem [shape: f32[16,32], index: 3, kind: output, shape index: {0}]
  %s4 = inlined_call_operand.vmem [shape: f32[16,32], index: 4, kind: output, shape index: {1}]
  %s5 = inlined_call_operand.vmem [shape: f32[16,32], index: 5, kind: output, shape index: {2}]
  %6 = xla_tuple %s3, %s4, %s5
  %s7 = sld [smem:[#allocation0]]
  $region38: #{encoder_forward.6} parent=0
    _
  %s9 = ssub.s32 1, %s7
  %s10 = scalar_select 0, %s9, %s7
  // Predicated region
  $region2: #{encoder_forward.6} parent=0 // pred_check
    _
  $region3: #{encoder_forward.6} parent=0 // pred_check_branch
    %12 = sbr.rel (0) target = $region5
  $region4: #{encoder_forward.6} parent=0 // pred_region
    _
  $region5: #{encoder_forward.6} parent=0 // pred_fallthru
    _
  // Predicated region
  $region6: #{encoder_forward.6} parent=0 // pred_check
    _
  $region7: #{encoder_forward.6} parent=0 // pred_check_branch
    %14 = sbr.rel (0) target = $region9
  $region8: #{encoder_forward.6} parent=0 // pred_region
    _
  $region9: #{encoder_forward.6} parent=0 // pred_fallthru
    _
  // Predicated region
  $region10: #{encoder_forward.6} parent=0 // pred_check
    _
  $region11: #{encoder_forward.6} parent=0 // pred_check_branch
    %16 = sbr.rel (0) target = $region13
  $region12: #{encoder_forward.6} parent=0 // pred_region
    _
  $region13: #{encoder_forward.6} parent=0 // pred_fallthru
    _
  %v17 = vld [vmem:[%s0] sm:$0xff]
  %v18 = vld [vmem:[%s0 + $0x8] sm:$0xff]
  %v19 = vld [vmem:[%s1] sm:$0xff]
  %v20 = vld [vmem:[%s1 + $0x8] sm:$0xff]
  %v21 = vld [vmem:[%s1 + $0x10] sm:$0xff]
  %v22 = vld [vmem:[%s1 + $0x18] sm:$0xff]
  %v23 = vld [vmem:[%s2] sm:$0x1]
  %v25 = vlaneseq
  %v26 = vshrl.u32 %v25, 7
  %v27 = vsub.s32 0, %v26
  %v28 = vrot.slane %v23, %v27
  %vm30 = vcmask 261120
  %v32 = vsel %vm30, %v17, 0
  %v35 = vsel %vm30, %v18, 0
  %37 = vmatprep.subr.mxu0 0.0
  %38 = vmatpush1.msra.mxu0 0.0
  %39 = vmatprep.subr.mxu0 0.0
  %40 = vmatpush1.msra.mxu0 0.0
  %41 = vmatprep.subr.mxu0 0.0
  %42 = vmatpush1.msra.mxu0 0.0
  %43 = vmatprep.subr.mxu0 0.0
  %44 = vmatpush1.msra.mxu0 0.0
  %45 = vmatprep.subr.mxu0 0.0
  %46 = vmatpush1.msra.mxu0 0.0
  %47 = vmatprep.subr.mxu0 0.0
  %48 = vmatpush1.msra.mxu0 0.0
  %49 = vmatprep.subr.mxu0 0.0
  %50 = vmatpush1.msra.mxu0 0.0
  %51 = vmatprep.subr.mxu0 0.0
  %52 = vmatpush1.msra.mxu0 0.0
  %53 = vmatprep.subr.mxu0 0.0
  %54 = vmatpush1.msra.mxu0 0.0
  %55 = vmatprep.subr.mxu0 0.0
  %56 = vmatpush1.msra.mxu0 0.0
  %57 = vmatprep.subr.mxu0 0.0
  %58 = vmatpush1.msra.mxu0 0.0
  %59 = vmatprep.subr.mxu0 0.0
  %60 = vmatpush1.msra.mxu0 0.0
  %61 = vmatprep.subr.mxu0 0.0
  %62 = vmatpush1.msra.mxu0 %v22
  %63 = vmatprep.subr.mxu0 0.0
  %64 = vmatpush1.msra.mxu0 %v21
  %65 = vmatprep.subr.mxu0 0.0
  %66 = vmatpush1.msra.mxu0 %v20
  %67 = vmatprep.subr.mxu0 0.0
  %68 = vmatpush1.msra.mxu0 %v19
  %69 = vmatprep.subr.mxu0 0.0
  %70 = vmatpush2.msra.mxu0 0.0
  %71 = vmatprep.subr.mxu0 0.0
  %72 = vmatpush2.msra.mxu0 0.0
  %73 = vmatprep.subr.mxu0 0.0
  %74 = vmatpush2.msra.mxu0 0.0
  %75 = vmatprep.subr.mxu0 0.0
  %76 = vmatpush2.msra.mxu0 0.0
  %77 = vmatprep.subr.mxu0 0.0
  %78 = vmatpush2.msra.mxu0 0.0
  %79 = vmatprep.subr.mxu0 0.0
  %80 = vmatpush2.msra.mxu0 0.0
  %81 = vmatprep.subr.mxu0 0.0
  %82 = vmatpush2.msra.mxu0 0.0
  %83 = vmatprep.subr.mxu0 0.0
  %84 = vmatpush2.msra.mxu0 0.0
  %85 = vmatprep.subr.mxu0 0.0
  %86 = vmatpush2.msra.mxu0 0.0
  %87 = vmatprep.subr.mxu0 0.0
  %88 = vmatpush2.msra.mxu0 0.0
  %89 = vmatprep.subr.mxu0 0.0
  %90 = vmatpush2.msra.mxu0 0.0
  %91 = vmatprep.subr.mxu0 0.0
  %92 = vmatpush2.msra.mxu0 0.0
  %93 = vmatprep.subr.mxu0 0.0
  %94 = vmatpush2.msra.mxu0 0.0
  %95 = vmatprep.subr.mxu0 0.0
  %96 = vmatpush2.msra.mxu0 0.0
  %97 = vmatprep.subr.mxu0 0.0
  %98 = vmatpush2.msra.mxu0 0.0
  %99 = vmatprep.subr.mxu0 0.0
  %100 = vmatpush2.msra.mxu0 0.0
  %101 = vmatprep.mubr.f32.mxu0 0.0
  %102 = vmatmul.mubr.f32.gmra.mxu0 %v32
  %v103 = vpop.f32.mrf.mxu0
  %v104 = vadd.f32 %v28, %v103
  %v105 = vpop.f32.mrf.mxu0
  %106 = vmatprep.mubr.f32.mxu0 0.0
  %107 = vmatmul.mubr.f32.gmra.mxu0 %v35
  %v108 = vpop.f32.mrf.mxu0
  %v109 = vadd.f32 %v28, %v108
  %v110 = vpop.f32.mrf.mxu0
  %111 = vdwg.mxu0
  %112 = vst.msk [vmem:[%s3] sm:$0xff] %vm30, %v104
  %113 = vst.msk [vmem:[%s3 + $0x8] sm:$0xff] %vm30, %v109
  %116 = vrot.lane.b32.xlu0 %v104, 96
  %v117 = vpop.permute.xlu0 %116
  %118 = vrot.lane.b32.xlu0 %v109, 96
  %v119 = vpop.permute.xlu0 %118
  %122 = vst.msk [vmem:[%s4] sm:$0xff] %vm30, %v117
  %123 = vst.msk [vmem:[%s4 + $0x8] sm:$0xff] %vm30, %v119
  %124 = vrot.lane.b32.xlu0 %v104, 64
  %v125 = vpop.permute.xlu0 %124
  %126 = vrot.lane.b32.xlu0 %v109, 64
  %v127 = vpop.permute.xlu0 %126
  %130 = vst.msk [vmem:[%s5] sm:$0xff] %vm30, %v125
  %131 = vst.msk [vmem:[%s5 + $0x8] sm:$0xff] %vm30, %v127
  // Predicated region
  $region14: #{encoder_forward.6} parent=0 // pred_check
    _
  $region15: #{encoder_forward.6} parent=0 // pred_check_branch
    %133 = sbr.rel (0) target = $region17
  $region16: #{encoder_forward.6} parent=0 // pred_region
    _
  $region17: #{encoder_forward.6} parent=0 // pred_fallthru
    _
  // Predicated region
  $region18: #{encoder_forward.6} parent=0 // pred_check
    _
  $region19: #{encoder_forward.6} parent=0 // pred_check_branch
    %135 = sbr.rel (0) target = $region21
  $region20: #{encoder_forward.6} parent=0 // pred_region
    _
  $region21: #{encoder_forward.6} parent=0 // pred_fallthru
    _
  // Predicated region
  $region22: #{encoder_forward.6} parent=0 // pred_check
    _
  $region23: #{encoder_forward.6} parent=0 // pred_check_branch
    %137 = sbr.rel (0) target = $region25
  $region24: #{encoder_forward.6} parent=0 // pred_region
    _
  $region25: #{encoder_forward.6} parent=0 // pred_fallthru
    _
  // Predicated region
  $region26: #{encoder_forward.6} parent=0 // pred_check
    _
  $region27: #{encoder_forward.6} parent=0 // pred_check_branch
    %139 = sbr.rel (0) target = $region29
  $region28: #{encoder_forward.6} parent=0 // pred_region
    _
  $region29: #{encoder_forward.6} parent=0 // pred_fallthru
    _
  // Predicated region
  $region30: #{encoder_forward.6} parent=0 // pred_check
    _
  $region31: #{encoder_forward.6} parent=0 // pred_check_branch
    %141 = sbr.rel (0) target = $region33
  $region32: #{encoder_forward.6} parent=0 // pred_region
    _
  $region33: #{encoder_forward.6} parent=0 // pred_fallthru
    _
  // Predicated region
  $region34: #{encoder_forward.6} parent=0 // pred_check
    _
  $region35: #{encoder_forward.6} parent=0 // pred_check_branch
    %143 = sbr.rel (0) target = $region37
  $region36: #{encoder_forward.6} parent=0 // pred_region
    _
  $region37: #{encoder_forward.6} parent=0 // pred_fallthru
    _

// kernel: encoder_forward.7
$region0: #{encoder_forward.7}
  #allocation0 [shape = 'u32[]', space=smem, size = 0x4, offset = 0x4, fixed_abs, tag = 'smem constant byte address 0x4 - core index']
  #allocation1 [shape = 'u32[144,128]{1,0:T(1,128)}', space=vmem, size = 0x12000, scoped, tag = 'internal scratch']
  #allocation2 [shape = 'f32[8,32]{1,0:T(8,128)}', space=vmem, size = 0x1000, scoped, tag = 'scratch operand']
  %s0 = inlined_call_operand.vmem [shape: f32[2,4,8,8], index: 0, kind: input, shape index: {}]
  %s1 = inlined_call_operand.vmem [shape: f32[2,4,8,8], index: 1, kind: input, shape index: {}]
  %s2 = inlined_call_operand.vmem [shape: f32[2,4,8,8], index: 2, kind: input, shape index: {}]
  %s3 = inlined_call_operand.vmem [shape: f32[2,8,32], index: 3, kind: input, shape index: {}]
  %s4 = inlined_call_operand.vmem [shape: f32[2,1,8], index: 4, kind: input, shape index: {}]
  %s5 = inlined_call_operand.vmem [shape: f32[32,32], index: 5, kind: input, shape index: {}]
  %s6 = inlined_call_operand.vmem [shape: f32[1,32], index: 6, kind: input, shape index: {}]
  %s7 = inlined_call_operand.vmem [shape: f32[1,32], index: 7, kind: input, shape index: {}]
  %s8 = inlined_call_operand.vmem [shape: f32[1,32], index: 8, kind: input, shape index: {}]
  %s9 = inlined_call_operand.vmem [shape: f32[32,64], index: 9, kind: input, shape index: {}]
  %s10 = inlined_call_operand.vmem [shape: f32[1,64], index: 10, kind: input, shape index: {}]
  %s11 = inlined_call_operand.vmem [shape: f32[64,32], index: 11, kind: input, shape index: {}]
  %s12 = inlined_call_operand.vmem [shape: f32[1,32], index: 12, kind: input, shape index: {}]
  %s13 = inlined_call_operand.vmem [shape: f32[1,32], index: 13, kind: input, shape index: {}]
  %s14 = inlined_call_operand.vmem [shape: f32[1,32], index: 14, kind: input, shape index: {}]
  %s15 = inlined_call_operand.hbm [shape: f32[2,8,32], index: 15, kind: output, shape index: {0}]
  %s16 = inlined_call_operand.hbm [shape: f32[2,4,8,8], index: 16, kind: output, shape index: {1}]
  %17 = xla_tuple %s15, %s16
  %s18 = sld [smem:[#allocation0]]
  $region101: #{encoder_forward.7} parent=0
    _
  %s20 = ssub.s32 1, %s18
  %s21 = scalar_select 0, %s20, %s18
  $region1: #{encoder_forward.7} parent=0
    #allocation3 [shape = 'u8[8192]{0}', space=vmem, size = 0x2000, scoped, tag = 'output window, operand 0']
    #allocation4 [shape = 's32[2]{0}', space=sflag, size = 0x8, scoped, tag = 'scoped memory for encoder_forward.7']
    #allocation5 [shape = 'u8[32768]{0}', space=vmem, size = 0x8000, scoped, tag = 'output window, operand 1']
    #allocation6 [shape = 's32[2]{0}', space=sflag, size = 0x8, scoped, tag = 'scoped memory for encoder_forward.7']
    %22 = vsyncpa [#allocation4], 0
    %s23 = scalar_lea.sflag [#allocation4], 1
    %24 = vsyncpa %s23, 0
    %25 = vsyncpa [#allocation6], 0
    %s26 = scalar_lea.sflag [#allocation6], 1
    %27 = vsyncpa %s26, 0
    loop: start=0, step=1, limit=4
    $region2: #{encoder_forward.7} parent=1 // loop_pre_header
      _
    $region3: #{encoder_forward.7} parent=1 // loop_header
      %s29 = sphi 0, %s33
      %p30 = scmp.ge.s32.totalorder %s29, 4
      %s36 = sphi 0, %s48
      %s37 = sphi 0, %s44
      %s38 = sphi 0, %s36
      %s39 = sphi 0, %s37
      %s40 = sphi 0, %s38
      %s41 = sphi 0, %s39
      %s53 = sphi 0, %s55
      %s56 = sphi 0, %s53
      %s57 = sphi 0, %s56
      %s73 = sphi 0, %s57
      %s79 = sphi 0, %s81
      %s82 = sphi 0, %s79
      %s83 = sphi 0, %s82
      %s99 = sphi 0, %s83
      %s105 = sphi 0, %s107
      %s108 = sphi 0, %s105
      %s109 = sphi 0, %s108
      %s125 = sphi 0, %s109
      %s133 = sphi 0, %s135
      %s136 = sphi 0, %s133
      %s137 = sphi 0, %s136
      %s153 = sphi 0, %s137
      %s159 = sphi 0, %s161
      %s162 = sphi 0, %s159
      %s163 = sphi 0, %s162
      %s179 = sphi 0, %s163
      %s183 = sphi 0, %s183
      %s185 = sphi 0, %s183
      %s186 = sphi 0, %s185
      %s200 = sphi 0, %s186
      %s204 = sphi 0, %s204
      %s206 = sphi 0, %s204
      %s207 = sphi 0, %s206
      %s221 = sphi 0, %s207
      %s225 = sphi 0, %s225
      %s227 = sphi 0, %s225
      %s228 = sphi 0, %s227
      %s242 = sphi 0, %s228
      %s246 = sphi 0, %s246
      %s248 = sphi 0, %s246
      %s249 = sphi 0, %s248
      %s263 = sphi 0, %s249
      %s267 = sphi 0, %s267
      %s269 = sphi 0, %s267
      %s270 = sphi 0, %s269
      %s284 = sphi 0, %s270
      %s288 = sphi 0, %s288
      %s290 = sphi 0, %s288
      %s291 = sphi 0, %s290
      %s305 = sphi 0, %s291
      %s309 = sphi 0, %s309
      %s311 = sphi 0, %s309
      %s312 = sphi 0, %s311
      %s326 = sphi 0, %s312
      %s330 = sphi 0, %s330
      %s332 = sphi 0, %s330
      %s333 = sphi 0, %s332
      %s347 = sphi 0, %s333
      %s351 = sphi 0, %s351
      %s353 = sphi 0, %s351
      %s354 = sphi 0, %s353
      %s368 = sphi 0, %s354
      %s372 = sphi 0, %s372
      %s374 = sphi 0, %s372
      %s375 = sphi 0, %s374
      %s389 = sphi 0, %s375
      %s397 = sphi 0, %s399
      %s400 = sphi 0, %s397
      %s401 = sphi 0, %s400
      %s417 = sphi 0, %s401
      %s425 = sphi 0, %s427
      %s428 = sphi 0, %s425
      %s429 = sphi 0, %s428
      %s445 = sphi 0, %s429
    $region4: #{encoder_forward.7} parent=1 // loop_header_branch
      %32 = sbr.rel (%p30) target = $region8
    $region5: #{encoder_forward.7} parent=1 // loop_body
      %s34 = ssub.s32 %s29, 1
      %s35 = ssub.s32 %s29, 2
      %s42 = sadd.s32 1, %s37
      %p43 = scmp.ge.s32.totalorder %s42, 1
      %s44 = scalar_select %p43, 0, %s42
      %s45 = sadd.s32 1, %s36
      %s46 = scalar_select %p43, %s45, %s36
      %p47 = scmp.ge.s32.totalorder %s46, 2
      %s48 = scalar_select %p47, 0, %s46
      %s49 = ssub.s32 %s36, %s48
      %s50 = ssub.s32 %s37, %s44
      %s51 = sor.u32 %s49, %s50
      %p52 = scmp.eq.s32.totalorder %s51, 0
      %s54 = sadd.s32 %s53, 1
      %s55 = scalar_select %p52, %s53, %s54
      %p58 = pneg %p52
      %p59 = scmp.eq.s32.totalorder %s29, 1
      %p60 = por %p58, %p59
      %p61 = scmp.ne.s32.totalorder %s53, %s56
      %p62 = scmp.eq.s32.totalorder %s29, 0
      %p63 = por %p61, %p62
      %p64 = scmp.ne.s32.totalorder %s53, %s56
      %p65 = scmp.eq.s32.totalorder %s34, 1
      %p66 = por %p64, %p65
      %p67 = scmp.ne.s32.totalorder %s56, %s57
      %p68 = scmp.eq.s32.totalorder %s34, 0
      %p69 = por %p67, %p68
      %p70 = scmp.ne.s32.totalorder %s56, %s57
      %p71 = scmp.eq.s32.totalorder %s35, 1
      %p72 = por %p70, %p71
      %p74 = scmp.ne.s32.totalorder %s57, %s73
      %p75 = scmp.eq.s32.totalorder %s35, 0
      %p76 = por %p74, %p75
      %s77 = ssub.s32 %s36, %s48
      %p78 = scmp.eq.s32.totalorder %s77, 0
      %s80 = sadd.s32 %s79, 1
      %s81 = scalar_select %p78, %s79, %s80
      %p84 = pneg %p78
      %p85 = scmp.eq.s32.totalorder %s29, 1
      %p86 = por %p84, %p85
      %p87 = scmp.ne.s32.totalorder %s79, %s82
      %p88 = scmp.eq.s32.totalorder %s29, 0
      %p89 = por %p87, %p88
      %p90 = scmp.ne.s32.totalorder %s79, %s82
      %p91 = scmp.eq.s32.totalorder %s34, 1
      %p92 = por %p90, %p91
      %p93 = scmp.ne.s32.totalorder %s82, %s83
      %p94 = scmp.eq.s32.totalorder %s34, 0
      %p95 = por %p93, %p94
      %p96 = scmp.ne.s32.totalorder %s82, %s83
      %p97 = scmp.eq.s32.totalorder %s35, 1
      %p98 = por %p96, %p97
      %p100 = scmp.ne.s32.totalorder %s83, %s99
      %p101 = scmp.eq.s32.totalorder %s35, 0
      %p102 = por %p100, %p101
      %s103 = ssub.s32 %s36, %s48
      %p104 = scmp.eq.s32.totalorder %s103, 0
      %s106 = sadd.s32 %s105, 1
      %s107 = scalar_select %p104, %s105, %s106
      %p110 = pneg %p104
      %p111 = scmp.eq.s32.totalorder %s29, 1
      %p112 = por %p110, %p111
      %p113 = scmp.ne.s32.totalorder %s105, %s108
      %p114 = scmp.eq.s32.totalorder %s29, 0
      %p115 = por %p113, %p114
      %p116 = scmp.ne.s32.totalorder %s105, %s108
      %p117 = scmp.eq.s32.totalorder %s34, 1
      %p118 = por %p116, %p117
      %p119 = scmp.ne.s32.totalorder %s108, %s109
      %p120 = scmp.eq.s32.totalorder %s34, 0
      %p121 = por %p119, %p120
      %p122 = scmp.ne.s32.totalorder %s108, %s109
      %p123 = scmp.eq.s32.totalorder %s35, 1
      %p124 = por %p122, %p123
      %p126 = scmp.ne.s32.totalorder %s109, %s125
      %p127 = scmp.eq.s32.totalorder %s35, 0
      %p128 = por %p126, %p127
      %s129 = ssub.s32 %s36, %s48
      %s130 = ssub.s32 %s37, %s44
      %s131 = sor.u32 %s129, %s130
      %p132 = scmp.eq.s32.totalorder %s131, 0
      %s134 = sadd.s32 %s133, 1
      %s135 = scalar_select %p132, %s133, %s134
      %p138 = pneg %p132
      %p139 = scmp.eq.s32.totalorder %s29, 1
      %p140 = por %p138, %p139
      %p141 = scmp.ne.s32.totalorder %s133, %s136
      %p142 = scmp.eq.s32.totalorder %s29, 0
      %p143 = por %p141, %p142
      %p144 = scmp.ne.s32.totalorder %s133, %s136
      %p145 = scmp.eq.s32.totalorder %s34, 1
      %p146 = por %p144, %p145
      %p147 = scmp.ne.s32.totalorder %s136, %s137
      %p148 = scmp.eq.s32.totalorder %s34, 0
      %p149 = por %p147, %p148
      %p150 = scmp.ne.s32.totalorder %s136, %s137
      %p151 = scmp.eq.s32.totalorder %s35, 1
      %p152 = por %p150, %p151
      %p154 = scmp.ne.s32.totalorder %s137, %s153
      %p155 = scmp.eq.s32.totalorder %s35, 0
      %p156 = por %p154, %p155
      %s157 = ssub.s32 %s36, %s48
      %p158 = scmp.eq.s32.totalorder %s157, 0
      %s160 = sadd.s32 %s159, 1
      %s161 = scalar_select %p158, %s159, %s160
      %p164 = pneg %p158
      %p165 = scmp.eq.s32.totalorder %s29, 1
      %p166 = por %p164, %p165
      %p167 = scmp.ne.s32.totalorder %s159, %s162
      %p168 = scmp.eq.s32.totalorder %s29, 0
      %p169 = por %p167, %p168
      %p170 = scmp.ne.s32.totalorder %s159, %s162
      %p171 = scmp.eq.s32.totalorder %s34, 1
      %p172 = por %p170, %p171
      %p173 = scmp.ne.s32.totalorder %s162, %s163
      %p174 = scmp.eq.s32.totalorder %s34, 0
      %p175 = por %p173, %p174
      %p176 = scmp.ne.s32.totalorder %s162, %s163
      %p177 = scmp.eq.s32.totalorder %s35, 1
      %p178 = por %p176, %p177
      %p180 = scmp.ne.s32.totalorder %s163, %s179
      %p181 = scmp.eq.s32.totalorder %s35, 0
      %p182 = por %p180, %p181
      %s184 = sadd.s32 %s183, 1
      %p187 = scmp.eq.s32.totalorder %s29, 1
      %p188 = scmp.ne.s32.totalorder %s183, %s185
      %p189 = scmp.eq.s32.totalorder %s29, 0
      %p190 = por %p188, %p189
      %p191 = scmp.ne.s32.totalorder %s183, %s185
      %p192 = scmp.eq.s32.totalorder %s34, 1
      %p193 = por %p191, %p192
      %p194 = scmp.ne.s32.totalorder %s185, %s186
      %p195 = scmp.eq.s32.totalorder %s34, 0
      %p196 = por %p194, %p195
      %p197 = scmp.ne.s32.totalorder %s185, %s186
      %p198 = scmp.eq.s32.totalorder %s35, 1
      %p199 = por %p197, %p198
      %p201 = scmp.ne.s32.totalorder %s186, %s200
      %p202 = scmp.eq.s32.totalorder %s35, 0
      %p203 = por %p201, %p202
      %s205 = sadd.s32 %s204, 1
      %p208 = scmp.eq.s32.totalorder %s29, 1
      %p209 = scmp.ne.s32.totalorder %s204, %s206
      %p210 = scmp.eq.s32.totalorder %s29, 0
      %p211 = por %p209, %p210
      %p212 = scmp.ne.s32.totalorder %s204, %s206
      %p213 = scmp.eq.s32.totalorder %s34, 1
      %p214 = por %p212, %p213
      %p215 = scmp.ne.s32.totalorder %s206, %s207
      %p216 = scmp.eq.s32.totalorder %s34, 0
      %p217 = por %p215, %p216
      %p218 = scmp.ne.s32.totalorder %s206, %s207
      %p219 = scmp.eq.s32.totalorder %s35, 1
      %p220 = por %p218, %p219
      %p222 = scmp.ne.s32.totalorder %s207, %s221
      %p223 = scmp.eq.s32.totalorder %s35, 0
      %p224 = por %p222, %p223
      %s226 = sadd.s32 %s225, 1
      %p229 = scmp.eq.s32.totalorder %s29, 1
      %p230 = scmp.ne.s32.totalorder %s225, %s227
      %p231 = scmp.eq.s32.totalorder %s29, 0
      %p232 = por %p230, %p231
      %p233 = scmp.ne.s32.totalorder %s225, %s227
      %p234 = scmp.eq.s32.totalorder %s34, 1
      %p235 = por %p233, %p234
      %p236 = scmp.ne.s32.totalorder %s227, %s228
      %p237 = scmp.eq.s32.totalorder %s34, 0
      %p238 = por %p236, %p237
      %p239 = scmp.ne.s32.totalorder %s227, %s228
      %p240 = scmp.eq.s32.totalorder %s35, 1
      %p241 = por %p239, %p240
      %p243 = scmp.ne.s32.totalorder %s228, %s242
      %p244 = scmp.eq.s32.totalorder %s35, 0
      %p245 = por %p243, %p244
      %s247 = sadd.s32 %s246, 1
      %p250 = scmp.eq.s32.totalorder %s29, 1
      %p251 = scmp.ne.s32.totalorder %s246, %s248
      %p252 = scmp.eq.s32.totalorder %s29, 0
      %p253 = por %p251, %p252
      %p254 = scmp.ne.s32.totalorder %s246, %s248
      %p255 = scmp.eq.s32.totalorder %s34, 1
      %p256 = por %p254, %p255
      %p257 = scmp.ne.s32.totalorder %s248, %s249
      %p258 = scmp.eq.s32.totalorder %s34, 0
      %p259 = por %p257, %p258
      %p260 = scmp.ne.s32.totalorder %s248, %s249
      %p261 = scmp.eq.s32.totalorder %s35, 1
      %p262 = por %p260, %p261
      %p264 = scmp.ne.s32.totalorder %s249, %s263
      %p265 = scmp.eq.s32.totalorder %s35, 0
      %p266 = por %p264, %p265
      %s268 = sadd.s32 %s267, 1
      %p271 = scmp.eq.s32.totalorder %s29, 1
      %p272 = scmp.ne.s32.totalorder %s267, %s269
      %p273 = scmp.eq.s32.totalorder %s29, 0
      %p274 = por %p272, %p273
      %p275 = scmp.ne.s32.totalorder %s267, %s269
      %p276 = scmp.eq.s32.totalorder %s34, 1
      %p277 = por %p275, %p276
      %p278 = scmp.ne.s32.totalorder %s269, %s270
      %p279 = scmp.eq.s32.totalorder %s34, 0
      %p280 = por %p278, %p279
      %p281 = scmp.ne.s32.totalorder %s269, %s270
      %p282 = scmp.eq.s32.totalorder %s35, 1
      %p283 = por %p281, %p282
      %p285 = scmp.ne.s32.totalorder %s270, %s284
      %p286 = scmp.eq.s32.totalorder %s35, 0
      %p287 = por %p285, %p286
      %s289 = sadd.s32 %s288, 1
      %p292 = scmp.eq.s32.totalorder %s29, 1
      %p293 = scmp.ne.s32.totalorder %s288, %s290
      %p294 = scmp.eq.s32.totalorder %s29, 0
      %p295 = por %p293, %p294
      %p296 = scmp.ne.s32.totalorder %s288, %s290
      %p297 = scmp.eq.s32.totalorder %s34, 1
      %p298 = por %p296, %p297
      %p299 = scmp.ne.s32.totalorder %s290, %s291
      %p300 = scmp.eq.s32.totalorder %s34, 0
      %p301 = por %p299, %p300
      %p302 = scmp.ne.s32.totalorder %s290, %s291
      %p303 = scmp.eq.s32.totalorder %s35, 1
      %p304 = por %p302, %p303
      %p306 = scmp.ne.s32.totalorder %s291, %s305
      %p307 = scmp.eq.s32.totalorder %s35, 0
      %p308 = por %p306, %p307
      %s310 = sadd.s32 %s309, 1
      %p313 = scmp.eq.s32.totalorder %s29, 1
      %p314 = scmp.ne.s32.totalorder %s309, %s311
      %p315 = scmp.eq.s32.totalorder %s29, 0
      %p316 = por %p314, %p315
      %p317 = scmp.ne.s32.totalorder %s309, %s311
      %p318 = scmp.eq.s32.totalorder %s34, 1
      %p319 = por %p317, %p318
      %p320 = scmp.ne.s32.totalorder %s311, %s312
      %p321 = scmp.eq.s32.totalorder %s34, 0
      %p322 = por %p320, %p321
      %p323 = scmp.ne.s32.totalorder %s311, %s312
      %p324 = scmp.eq.s32.totalorder %s35, 1
      %p325 = por %p323, %p324
      %p327 = scmp.ne.s32.totalorder %s312, %s326
      %p328 = scmp.eq.s32.totalorder %s35, 0
      %p329 = por %p327, %p328
      %s331 = sadd.s32 %s330, 1
      %p334 = scmp.eq.s32.totalorder %s29, 1
      %p335 = scmp.ne.s32.totalorder %s330, %s332
      %p336 = scmp.eq.s32.totalorder %s29, 0
      %p337 = por %p335, %p336
      %p338 = scmp.ne.s32.totalorder %s330, %s332
      %p339 = scmp.eq.s32.totalorder %s34, 1
      %p340 = por %p338, %p339
      %p341 = scmp.ne.s32.totalorder %s332, %s333
      %p342 = scmp.eq.s32.totalorder %s34, 0
      %p343 = por %p341, %p342
      %p344 = scmp.ne.s32.totalorder %s332, %s333
      %p345 = scmp.eq.s32.totalorder %s35, 1
      %p346 = por %p344, %p345
      %p348 = scmp.ne.s32.totalorder %s333, %s347
      %p349 = scmp.eq.s32.totalorder %s35, 0
      %p350 = por %p348, %p349
      %s352 = sadd.s32 %s351, 1
      %p355 = scmp.eq.s32.totalorder %s29, 1
      %p356 = scmp.ne.s32.totalorder %s351, %s353
      %p357 = scmp.eq.s32.totalorder %s29, 0
      %p358 = por %p356, %p357
      %p359 = scmp.ne.s32.totalorder %s351, %s353
      %p360 = scmp.eq.s32.totalorder %s34, 1
      %p361 = por %p359, %p360
      %p362 = scmp.ne.s32.totalorder %s353, %s354
      %p363 = scmp.eq.s32.totalorder %s34, 0
      %p364 = por %p362, %p363
      %p365 = scmp.ne.s32.totalorder %s353, %s354
      %p366 = scmp.eq.s32.totalorder %s35, 1
      %p367 = por %p365, %p366
      %p369 = scmp.ne.s32.totalorder %s354, %s368
      %p370 = scmp.eq.s32.totalorder %s35, 0
      %p371 = por %p369, %p370
      %s373 = sadd.s32 %s372, 1
      %p376 = scmp.eq.s32.totalorder %s29, 1
      %p377 = scmp.ne.s32.totalorder %s372, %s374
      %p378 = scmp.eq.s32.totalorder %s29, 0
      %p379 = por %p377, %p378
      %p380 = scmp.ne.s32.totalorder %s372, %s374
      %p381 = scmp.eq.s32.totalorder %s34, 1
      %p382 = por %p380, %p381
      %p383 = scmp.ne.s32.totalorder %s374, %s375
      %p384 = scmp.eq.s32.totalorder %s34, 0
      %p385 = por %p383, %p384
      %p386 = scmp.ne.s32.totalorder %s374, %s375
      %p387 = scmp.eq.s32.totalorder %s35, 1
      %p388 = por %p386, %p387
      %p390 = scmp.ne.s32.totalorder %s375, %s389
      %p391 = scmp.eq.s32.totalorder %s35, 0
      %p392 = por %p390, %p391
      %s393 = ssub.s32 %s36, %s48
      %s394 = ssub.s32 %s37, %s44
      %s395 = sor.u32 %s393, %s394
      %p396 = scmp.eq.s32.totalorder %s395, 0
      %s398 = sadd.s32 %s397, 1
      %s399 = scalar_select %p396, %s397, %s398
      %p402 = pneg %p396
      %p403 = scmp.eq.s32.totalorder %s29, 1
      %p404 = por %p402, %p403
      %p405 = scmp.ne.s32.totalorder %s397, %s400
      %p406 = scmp.eq.s32.totalorder %s29, 0
      %p407 = por %p405, %p406
      %p408 = scmp.ne.s32.totalorder %s397, %s400
      %p409 = scmp.eq.s32.totalorder %s34, 1
      %p410 = por %p408, %p409
      %p411 = scmp.ne.s32.totalorder %s400, %s401
      %p412 = scmp.eq.s32.totalorder %s34, 0
      %p413 = por %p411, %p412
      %p414 = scmp.ne.s32.totalorder %s400, %s401
      %p415 = scmp.eq.s32.totalorder %s35, 1
      %p416 = por %p414, %p415
      %p418 = scmp.ne.s32.totalorder %s401, %s417
      %p419 = scmp.eq.s32.totalorder %s35, 0
      %p420 = por %p418, %p419
      %s421 = ssub.s32 %s36, %s48
      %s422 = ssub.s32 %s37, %s44
      %s423 = sor.u32 %s421, %s422
      %p424 = scmp.eq.s32.totalorder %s423, 0
      %s426 = sadd.s32 %s425, 1
      %s427 = scalar_select %p424, %s425, %s426
      %p430 = pneg %p424
      %p431 = scmp.eq.s32.totalorder %s29, 1
      %p432 = por %p430, %p431
      %p433 = scmp.ne.s32.totalorder %s425, %s428
      %p434 = scmp.eq.s32.totalorder %s29, 0
      %p435 = por %p433, %p434
      %p436 = scmp.ne.s32.totalorder %s425, %s428
      %p437 = scmp.eq.s32.totalorder %s34, 1
      %p438 = por %p436, %p437
      %p439 = scmp.ne.s32.totalorder %s428, %s429
      %p440 = scmp.eq.s32.totalorder %s34, 0
      %p441 = por %p439, %p440
      %p442 = scmp.ne.s32.totalorder %s428, %s429
      %p443 = scmp.eq.s32.totalorder %s35, 1
      %p444 = por %p442, %p443
      %p446 = scmp.ne.s32.totalorder %s429, %s445
      %p447 = scmp.eq.s32.totalorder %s35, 0
      %p448 = por %p446, %p447
      %p449 = scmp.le.s32.totalorder 1, %s29
      %p450 = scmp.lt.s32.totalorder %s29, 3
      %p451 = pnand %p449, %p450
      %p452 = pneg %p451
      // Predicated region
      $region9: #{encoder_forward.7} parent=5 // pred_check
        _
      $region10: #{encoder_forward.7} parent=5 // pred_check_branch
        %454 = sbr.rel (%p451) target = $region12
      $region11: #{encoder_forward.7} parent=5 // pred_region
        %s455 = ssub.s32 %s29, 1
        // Predicated region
        $region13: #{encoder_forward.7} parent=11 // pred_check
          %p456 = pneg %p196
        $region14: #{encoder_forward.7} parent=11 // pred_check_branch
          %458 = sbr.rel (%p456) target = $region16
        $region15: #{encoder_forward.7} parent=11 // pred_region
          _
        $region16: #{encoder_forward.7} parent=11 // pred_fallthru
          _
        // Predicated region
        $region17: #{encoder_forward.7} parent=11 // pred_check
          %p459 = pneg %p217
        $region18: #{encoder_forward.7} parent=11 // pred_check_branch
          %461 = sbr.rel (%p459) target = $region20
        $region19: #{encoder_forward.7} parent=11 // pred_region
          _
        $region20: #{encoder_forward.7} parent=11 // pred_fallthru
          _
        // Predicated region
        $region21: #{encoder_forward.7} parent=11 // pred_check
          %p462 = pneg %p238
        $region22: #{encoder_forward.7} parent=11 // pred_check_branch
          %464 = sbr.rel (%p462) target = $region24
        $region23: #{encoder_forward.7} parent=11 // pred_region
          _
        $region24: #{encoder_forward.7} parent=11 // pred_fallthru
          _
        // Predicated region
        $region25: #{encoder_forward.7} parent=11 // pred_check
          %p465 = pneg %p259
        $region26: #{encoder_forward.7} parent=11 // pred_check_branch
          %467 = sbr.rel (%p465) target = $region28
        $region27: #{encoder_forward.7} parent=11 // pred_region
          _
        $region28: #{encoder_forward.7} parent=11 // pred_fallthru
          _
        // Predicated region
        $region29: #{encoder_forward.7} parent=11 // pred_check
          %p468 = pneg %p280
        $region30: #{encoder_forward.7} parent=11 // pred_check_branch
          %470 = sbr.rel (%p468) target = $region32
        $region31: #{encoder_forward.7} parent=11 // pred_region
          _
        $region32: #{encoder_forward.7} parent=11 // pred_fallthru
          _
        // Predicated region
        $region33: #{encoder_forward.7} parent=11 // pred_check
          %p471 = pneg %p301
        $region34: #{encoder_forward.7} parent=11 // pred_check_branch
          %473 = sbr.rel (%p471) target = $region36
        $region35: #{encoder_forward.7} parent=11 // pred_region
          _
        $region36: #{encoder_forward.7} parent=11 // pred_fallthru
          _
        // Predicated region
        $region37: #{encoder_forward.7} parent=11 // pred_check
          %p474 = pneg %p322
        $region38: #{encoder_forward.7} parent=11 // pred_check_branch
          %476 = sbr.rel (%p474) target = $region40
        $region39: #{encoder_forward.7} parent=11 // pred_region
          _
        $region40: #{encoder_forward.7} parent=11 // pred_fallthru
          _
        // Predicated region
        $region41: #{encoder_forward.7} parent=11 // pred_check
          %p477 = pneg %p343
        $region42: #{encoder_forward.7} parent=11 // pred_check_branch
          %479 = sbr.rel (%p477) target = $region44
        $region43: #{encoder_forward.7} parent=11 // pred_region
          _
        $region44: #{encoder_forward.7} parent=11 // pred_fallthru
          _
        // Predicated region
        $region45: #{encoder_forward.7} parent=11 // pred_check
          %p480 = pneg %p364
        $region46: #{encoder_forward.7} parent=11 // pred_check_branch
          %482 = sbr.rel (%p480) target = $region48
        $region47: #{encoder_forward.7} parent=11 // pred_region
          _
        $region48: #{encoder_forward.7} parent=11 // pred_fallthru
          _
        // Predicated region
        $region49: #{encoder_forward.7} parent=11 // pred_check
          %p483 = pneg %p385
        $region50: #{encoder_forward.7} parent=11 // pred_check_branch
          %485 = sbr.rel (%p483) target = $region52
        $region51: #{encoder_forward.7} parent=11 // pred_region
          _
        $region52: #{encoder_forward.7} parent=11 // pred_fallthru
          _
      $region12: #{encoder_forward.7} parent=5 // pred_fallthru
        _
      %p486 = scmp.lt.s32.totalorder %s29, 2
      // Predicated region
      $region53: #{encoder_forward.7} parent=5 // pred_check
        %p487 = pneg %p486
      $region54: #{encoder_forward.7} parent=5 // pred_check_branch
        %489 = sbr.rel (%p487) target = $region56
      $region55: #{encoder_forward.7} parent=5 // pred_region
        // Predicated region
        $region57: #{encoder_forward.7} parent=55 // pred_check
          %p490 = pneg %p63
        $region58: #{encoder_forward.7} parent=55 // pred_check_branch
          %492 = sbr.rel (%p490) target = $region60
        $region59: #{encoder_forward.7} parent=55 // pred_region
          %p493 = scmp.lt.s32.totalorder %s36, 1
          %s494 = scalar_select %p493, %s36, 1
          %p495 = scmp.lt.s32.totalorder %s37, 0
          %s496 = scalar_select %p495, %s37, 0
          %s497 = smul.addr %s494, 4
          %s498 = sadd.s32 %s496, %s497
          %s499 = smul.addr %s498, 8
          %s500 = scalar_lea.vmem %s0, %s499
        $region60: #{encoder_forward.7} parent=55 // pred_fallthru
          _
        // Predicated region
        $region61: #{encoder_forward.7} parent=55 // pred_check
          %p501 = pneg %p89
        $region62: #{encoder_forward.7} parent=55 // pred_check_branch
          %503 = sbr.rel (%p501) target = $region64
        $region63: #{encoder_forward.7} parent=55 // pred_region
          %p504 = scmp.lt.s32.totalorder %s36, 1
          %s505 = scalar_select %p504, %s36, 1
          %s506 = smul.addr %s505, 4
          %s507 = smul.addr %s506, 8
          %s508 = scalar_lea.vmem %s1, %s507
        $region64: #{encoder_forward.7} parent=55 // pred_fallthru
          _
        // Predicated region
        $region65: #{encoder_forward.7} parent=55 // pred_check
          %p509 = pneg %p115
        $region66: #{encoder_forward.7} parent=55 // pred_check_branch
          %511 = sbr.rel (%p509) target = $region68
        $region67: #{encoder_forward.7} parent=55 // pred_region
          %p512 = scmp.lt.s32.totalorder %s36, 1
          %s513 = scalar_select %p512, %s36, 1
          %s514 = smul.addr %s513, 4
          %s515 = smul.addr %s514, 8
          %s516 = scalar_lea.vmem %s2, %s515
        $region68: #{encoder_forward.7} parent=55 // pred_fallthru
          _
        // Predicated region
        $region69: #{encoder_forward.7} parent=55 // pred_check
          %p517 = pneg %p143
        $region70: #{encoder_forward.7} parent=55 // pred_check_branch
          %519 = sbr.rel (%p517) target = $region72
        $region71: #{encoder_forward.7} parent=55 // pred_region
          %p520 = scmp.lt.s32.totalorder %s36, 1
          %s521 = scalar_select %p520, %s36, 1
          %p522 = scmp.lt.s32.totalorder %s37, 0
          %s523 = scalar_select %p522, %s37, 0
          %s524 = sadd.s32 %s523, %s521
          %s525 = smul.addr %s524, 8
          %s526 = scalar_lea.vmem %s3, %s525
        $region72: #{encoder_forward.7} parent=55 // pred_fallthru
          _
        // Predicated region
        $region73: #{encoder_forward.7} parent=55 // pred_check
          %p527 = pneg %p169
        $region74: #{encoder_forward.7} parent=55 // pred_check_branch
          %529 = sbr.rel (%p527) target = $region76
        $region75: #{encoder_forward.7} parent=55 // pred_region
          %p530 = scmp.lt.s32.totalorder %s36, 1
          %s531 = scalar_select %p530, %s36, 1
          %s532 = scalar_lea.vmem %s4, %s531
        $region76: #{encoder_forward.7} parent=55 // pred_fallthru
          _
      $region56: #{encoder_forward.7} parent=5 // pred_fallthru
        _
      %p533 = scmp.le.s32.totalorder 1, %s29
      %p534 = scmp.lt.s32.totalorder %s29, 3
      %p535 = pnand %p533, %p534
      %p536 = pneg %p535
      // Predicated region
      $region77: #{encoder_forward.7} parent=5 // pred_check
        _
      $region78: #{encoder_forward.7} parent=5 // pred_check_branch
        %538 = sbr.rel (%p535) target = $region80
      $region79: #{encoder_forward.7} parent=5 // pred_region
        %s539 = ssub.s32 %s29, 1
        %p540 = scmp.lt.s32.totalorder %s38, 1
        %s541 = scalar_select %p540, %s38, 1
        %p542 = scmp.lt.s32.totalorder %s39, 0
        %s543 = scalar_select %p542, %s39, 0
        %s544 = smul.addr %s541, 4
        %s545 = sadd.s32 %s543, %s544
        %s546 = smul.addr %s545, 8
        %s547 = scalar_lea.vmem %s0, %s546
        %p548 = pneg %p69
        %p549 = pneg %p66
        %p550 = scmp.lt.s32.totalorder %s38, 1
        %s551 = scalar_select %p550, %s38, 1
        %s552 = smul.addr %s551, 4
        %s553 = smul.addr %s552, 8
        %s554 = scalar_lea.vmem %s1, %s553
        %p555 = pneg %p95
        %p556 = pneg %p92
        %p557 = scmp.lt.s32.totalorder %s38, 1
        %s558 = scalar_select %p557, %s38, 1
        %s559 = smul.addr %s558, 4
        %s560 = smul.addr %s559, 8
        %s561 = scalar_lea.vmem %s2, %s560
        %p562 = pneg %p121
        %p563 = pneg %p118
        %p564 = scmp.lt.s32.totalorder %s38, 1
        %s565 = scalar_select %p564, %s38, 1
        %p566 = scmp.lt.s32.totalorder %s39, 0
        %s567 = scalar_select %p566, %s39, 0
        %s568 = sadd.s32 %s567, %s565
        %s569 = smul.addr %s568, 8
        %s570 = scalar_lea.vmem %s3, %s569
        %p571 = pneg %p149
        %p572 = pneg %p146
        %p573 = scmp.lt.s32.totalorder %s38, 1
        %s574 = scalar_select %p573, %s38, 1
        %s575 = scalar_lea.vmem %s4, %s574
        %p576 = pneg %p175
        %p577 = pneg %p172
        %p578 = pneg %p196
        %p579 = pneg %p193
        %p580 = pneg %p217
        %p581 = pneg %p214
        %p582 = pneg %p238
        %p583 = pneg %p235
        %p584 = pneg %p259
        %p585 = pneg %p256
        %p586 = pneg %p280
        %p587 = pneg %p277
        %p588 = pneg %p301
        %p589 = pneg %p298
        %p590 = pneg %p322
        %p591 = pneg %p319
        %p592 = pneg %p343
        %p593 = pneg %p340
        %p594 = pneg %p364
        %p595 = pneg %p361
        %p596 = pneg %p385
        %p597 = pneg %p382
        %p598 = pneg %p413
        %p599 = pneg %p410
        %s600 = sand.u32 %s400, 1
        %s601 = scalar_lea.sflag [#allocation4], %s600
        %s602 = sand.u32 %s400, 1
        %s603 = smul.addr %s602, 8
        %s604 = scalar_lea.vmem [#allocation3], %s603
        %p605 = pneg %p441
        %p606 = pneg %p438
        %s607 = sand.u32 %s428, 1
        %s608 = scalar_lea.sflag [#allocation6], %s607
        %s609 = sand.u32 %s428, 1
        %s610 = smul.addr %s609, 32
        %s611 = scalar_lea.vmem [#allocation5], %s610
        %p612 = scmp.lt.s32.totalorder %s38, 1
        %s613 = scalar_select %p612, %s38, 1
        %p614 = scmp.lt.s32.totalorder %s39, 0
        %s615 = scalar_select %p614, %s39, 0
        %s616 = smul.addr %s613, 4
        %s617 = sadd.s32 %s615, %s616
        %s618 = smul.addr %s617, 8
        %s619 = scalar_lea.vmem %s0, %s618
        %p620 = scmp.lt.s32.totalorder %s38, 1
        %s621 = scalar_select %p620, %s38, 1
        %s622 = smul.addr %s621, 4
        %s623 = smul.addr %s622, 8
        %s624 = scalar_lea.vmem %s1, %s623
        %p625 = scmp.lt.s32.totalorder %s38, 1
        %s626 = scalar_select %p625, %s38, 1
        %s627 = smul.addr %s626, 4
        %s628 = smul.addr %s627, 8
        %s629 = scalar_lea.vmem %s2, %s628
        %p630 = scmp.lt.s32.totalorder %s38, 1
        %s631 = scalar_select %p630, %s38, 1
        %p632 = scmp.lt.s32.totalorder %s39, 0
        %s633 = scalar_select %p632, %s39, 0
        %s634 = sadd.s32 %s633, %s631
        %s635 = smul.addr %s634, 8
        %s636 = scalar_lea.vmem %s3, %s635
        %p637 = scmp.lt.s32.totalorder %s38, 1
        %s638 = scalar_select %p637, %s38, 1
        %s639 = scalar_lea.vmem %s4, %s638
        %v640 = vld [vmem:[%s619] sm:$0xff]
        %v641 = vld [vmem:[%s619 + $0x8] sm:$0xff]
        %v642 = vld [vmem:[%s619 + $0x10] sm:$0xff]
        %v643 = vld [vmem:[%s619 + $0x18] sm:$0xff]
        %v644 = vld [vmem:[%s624] sm:$0xff]
        %v645 = vld [vmem:[%s624 + $0x8] sm:$0xff]
        %v646 = vld [vmem:[%s624 + $0x10] sm:$0xff]
        %v647 = vld [vmem:[%s624 + $0x18] sm:$0xff]
        %v648 = vld [vmem:[%s629] sm:$0xff]
        %v649 = vld [vmem:[%s629 + $0x8] sm:$0xff]
        %v650 = vld [vmem:[%s629 + $0x10] sm:$0xff]
        %v651 = vld [vmem:[%s629 + $0x18] sm:$0xff]
        %v652 = vld [vmem:[%s636] sm:$0xff]
        %v653 = vld [vmem:[%s639] sm:$0x1]
        %vm654 = vcmp.gt.f32.partialorder %v653, 0.0
        %vm655 = vcmask 64512
        %v657 = vsel %vm655, %v640, 0
        %v660 = vsel %vm655, %v644, 0
        %662 = vmatprep.subr.mxu0 0.0
        %663 = vmatpush1.xpose.msra.mxu0 0.0
        %664 = vmatprep.subr.mxu0 0.0
        %665 = vmatpush1.xpose.msra.mxu0 0.0
        %666 = vmatprep.subr.mxu0 0.0
        %667 = vmatpush1.xpose.msra.mxu0 0.0
        %668 = vmatprep.subr.mxu0 0.0
        %669 = vmatpush1.xpose.msra.mxu0 0.0
        %670 = vmatprep.subr.mxu0 0.0
        %671 = vmatpush1.xpose.msra.mxu0 0.0
        %672 = vmatprep.subr.mxu0 0.0
        %673 = vmatpush1.xpose.msra.mxu0 0.0
        %674 = vmatprep.subr.mxu0 0.0
        %675 = vmatpush1.xpose.msra.mxu0 0.0
        %676 = vmatprep.subr.mxu0 0.0
        %677 = vmatpush1.xpose.msra.mxu0 0.0
        %678 = vmatprep.subr.mxu0 0.0
        %679 = vmatpush1.xpose.msra.mxu0 0.0
        %680 = vmatprep.subr.mxu0 0.0
        %681 = vmatpush1.xpose.msra.mxu0 0.0
        %682 = vmatprep.subr.mxu0 0.0
        %683 = vmatpush1.xpose.msra.mxu0 0.0
        %684 = vmatprep.subr.mxu0 0.0
        %685 = vmatpush1.xpose.msra.mxu0 0.0
        %686 = vmatprep.subr.mxu0 0.0
        %687 = vmatpush1.xpose.msra.mxu0 0.0
        %688 = vmatprep.subr.mxu0 0.0
        %689 = vmatpush1.xpose.msra.mxu0 0.0
        %690 = vmatprep.subr.mxu0 0.0
        %691 = vmatpush1.xpose.msra.mxu0 0.0
        %692 = vmatprep.subr.mxu0 0.0
        %693 = vmatpush1.xpose.msra.mxu0 %v660
        %694 = vmatprep.subr.mxu0 0.0
        %695 = vmatpush2.xpose.msra.mxu0 0.0
        %696 = vmatprep.subr.mxu0 0.0
        %697 = vmatpush2.xpose.msra.mxu0 0.0
        %698 = vmatprep.subr.mxu0 0.0
        %699 = vmatpush2.xpose.msra.mxu0 0.0
        %700 = vmatprep.subr.mxu0 0.0
        %701 = vmatpush2.xpose.msra.mxu0 0.0
        %702 = vmatprep.subr.mxu0 0.0
        %703 = vmatpush2.xpose.msra.mxu0 0.0
        %704 = vmatprep.subr.mxu0 0.0
        %705 = vmatpush2.xpose.msra.mxu0 0.0
        %706 = vmatprep.subr.mxu0 0.0
        %707 = vmatpush2.xpose.msra.mxu0 0.0
        %708 = vmatprep.subr.mxu0 0.0
        %709 = vmatpush2.xpose.msra.mxu0 0.0
        %710 = vmatprep.subr.mxu0 0.0
        %711 = vmatpush2.xpose.msra.mxu0 0.0
        %712 = vmatprep.subr.mxu0 0.0
        %713 = vmatpush2.xpose.msra.mxu0 0.0
        %714 = vmatprep.subr.mxu0 0.0
        %715 = vmatpush2.xpose.msra.mxu0 0.0
        %716 = vmatprep.subr.mxu0 0.0
        %717 = vmatpush2.xpose.msra.mxu0 0.0
        %718 = vmatprep.subr.mxu0 0.0
        %719 = vmatpush2.xpose.msra.mxu0 0.0
        %720 = vmatprep.subr.mxu0 0.0
        %721 = vmatpush2.xpose.msra.mxu0 0.0
        %722 = vmatprep.subr.mxu0 0.0
        %723 = vmatpush2.xpose.msra.mxu0 0.0
        %724 = vmatprep.subr.mxu0 0.0
        %725 = vmatpush2.xpose.msra.mxu0 0.0
        %726 = vmatprep.mubr.f32.mxu0 0.0
        %727 = vmatmul.mubr.f32.gmra.mxu0 %v657
        %v728 = vpop.f32.mrf.mxu0
        %v729 = vadd.f32 0.0, %v728
        %v730 = vpop.f32.mrf.mxu0
        %731 = vdwg.mxu0
        %v733 = vsel %vm655, %v641, 0
        %v736 = vsel %vm655, %v645, 0
        %738 = vmatprep.subr.mxu0 0.0
        %739 = vmatpush1.xpose.msra.mxu0 0.0
        %740 = vmatprep.subr.mxu0 0.0
        %741 = vmatpush1.xpose.msra.mxu0 0.0
        %742 = vmatprep.subr.mxu0 0.0
        %743 = vmatpush1.xpose.msra.mxu0 0.0
        %744 = vmatprep.subr.mxu0 0.0
        %745 = vmatpush1.xpose.msra.mxu0 0.0
        %746 = vmatprep.subr.mxu0 0.0
        %747 = vmatpush1.xpose.msra.mxu0 0.0
        %748 = vmatprep.subr.mxu0 0.0
        %749 = vmatpush1.xpose.msra.mxu0 0.0
        %750 = vmatprep.subr.mxu0 0.0
        %751 = vmatpush1.xpose.msra.mxu0 0.0
        %752 = vmatprep.subr.mxu0 0.0
        %753 = vmatpush1.xpose.msra.mxu0 0.0
        %754 = vmatprep.subr.mxu0 0.0
        %755 = vmatpush1.xpose.msra.mxu0 0.0
        %756 = vmatprep.subr.mxu0 0.0
        %757 = vmatpush1.xpose.msra.mxu0 0.0
        %758 = vmatprep.subr.mxu0 0.0
        %759 = vmatpush1.xpose.msra.mxu0 0.0
        %760 = vmatprep.subr.mxu0 0.0
        %761 = vmatpush1.xpose.msra.mxu0 0.0
        %762 = vmatprep.subr.mxu0 0.0
        %763 = vmatpush1.xpose.msra.mxu0 0.0
        %764 = vmatprep.subr.mxu0 0.0
        %765 = vmatpush1.xpose.msra.mxu0 0.0
        %766 = vmatprep.subr.mxu0 0.0
        %767 = vmatpush1.xpose.msra.mxu0 0.0
        %768 = vmatprep.subr.mxu0 0.0
        %769 = vmatpush1.xpose.msra.mxu0 %v736
        %770 = vmatprep.subr.mxu0 0.0
        %771 = vmatpush2.xpose.msra.mxu0 0.0
        %772 = vmatprep.subr.mxu0 0.0
        %773 = vmatpush2.xpose.msra.mxu0 0.0
        %774 = vmatprep.subr.mxu0 0.0
        %775 = vmatpush2.xpose.msra.mxu0 0.0
        %776 = vmatprep.subr.mxu0 0.0
        %777 = vmatpush2.xpose.msra.mxu0 0.0
        %778 = vmatprep.subr.mxu0 0.0
        %779 = vmatpush2.xpose.msra.mxu0 0.0
        %780 = vmatprep.subr.mxu0 0.0
        %781 = vmatpush2.xpose.msra.mxu0 0.0
        %782 = vmatprep.subr.mxu0 0.0
        %783 = vmatpush2.xpose.msra.mxu0 0.0
        %784 = vmatprep.subr.mxu0 0.0
        %785 = vmatpush2.xpose.msra.mxu0 0.0
        %786 = vmatprep.subr.mxu0 0.0
        %787 = vmatpush2.xpose.msra.mxu0 0.0
        %788 = vmatprep.subr.mxu0 0.0
        %789 = vmatpush2.xpose.msra.mxu0 0.0
        %790 = vmatprep.subr.mxu0 0.0
        %791 = vmatpush2.xpose.msra.mxu0 0.0
        %792 = vmatprep.subr.mxu0 0.0
        %793 = vmatpush2.xpose.msra.mxu0 0.0
        %794 = vmatprep.subr.mxu0 0.0
        %795 = vmatpush2.xpose.msra.mxu0 0.0
        %796 = vmatprep.subr.mxu0 0.0
        %797 = vmatpush2.xpose.msra.mxu0 0.0
        %798 = vmatprep.subr.mxu0 0.0
        %799 = vmatpush2.xpose.msra.mxu0 0.0
        %800 = vmatprep.subr.mxu0 0.0
        %801 = vmatpush2.xpose.msra.mxu0 0.0
        %802 = vmatprep.mubr.f32.mxu0 0.0
        %803 = vmatmul.mubr.f32.gmra.mxu0 %v733
        %v804 = vpop.f32.mrf.mxu0
        %v805 = vadd.f32 0.0, %v804
        %v806 = vpop.f32.mrf.mxu0
        %807 = vdwg.mxu0
        %v809 = vsel %vm655, %v642, 0
        %v812 = vsel %vm655, %v646, 0
        %814 = vmatprep.subr.mxu0 0.0
        %815 = vmatpush1.xpose.msra.mxu0 0.0
        %816 = vmatprep.subr.mxu0 0.0
        %817 = vmatpush1.xpose.msra.mxu0 0.0
        %818 = vmatprep.subr.mxu0 0.0
        %819 = vmatpush1.xpose.msra.mxu0 0.0
        %820 = vmatprep.subr.mxu0 0.0
        %821 = vmatpush1.xpose.msra.mxu0 0.0
        %822 = vmatprep.subr.mxu0 0.0
        %823 = vmatpush1.xpose.msra.mxu0 0.0
        %824 = vmatprep.subr.mxu0 0.0
        %825 = vmatpush1.xpose.msra.mxu0 0.0
        %826 = vmatprep.subr.mxu0 0.0
        %827 = vmatpush1.xpose.msra.mxu0 0.0
        %828 = vmatprep.subr.mxu0 0.0
        %829 = vmatpush1.xpose.msra.mxu0 0.0
        %830 = vmatprep.subr.mxu0 0.0
        %831 = vmatpush1.xpose.msra.mxu0 0.0
        %832 = vmatprep.subr.mxu0 0.0
        %833 = vmatpush1.xpose.msra.mxu0 0.0
        %834 = vmatprep.subr.mxu0 0.0
        %835 = vmatpush1.xpose.msra.mxu0 0.0
        %836 = vmatprep.subr.mxu0 0.0
        %837 = vmatpush1.xpose.msra.mxu0 0.0
        %838 = vmatprep.subr.mxu0 0.0
        %839 = vmatpush1.xpose.msra.mxu0 0.0
        %840 = vmatprep.subr.mxu0 0.0
        %841 = vmatpush1.xpose.msra.mxu0 0.0
        %842 = vmatprep.subr.mxu0 0.0
        %843 = vmatpush1.xpose.msra.mxu0 0.0
        %844 = vmatprep.subr.mxu0 0.0
        %845 = vmatpush1.xpose.msra.mxu0 %v812
        %846 = vmatprep.subr.mxu0 0.0
        %847 = vmatpush2.xpose.msra.mxu0 0.0
        %848 = vmatprep.subr.mxu0 0.0
        %849 = vmatpush2.xpose.msra.mxu0 0.0
        %850 = vmatprep.subr.mxu0 0.0
        %851 = vmatpush2.xpose.msra.mxu0 0.0
        %852 = vmatprep.subr.mxu0 0.0
        %853 = vmatpush2.xpose.msra.mxu0 0.0
        %854 = vmatprep.subr.mxu0 0.0
        %855 = vmatpush2.xpose.msra.mxu0 0.0
        %856 = vmatprep.subr.mxu0 0.0
        %857 = vmatpush2.xpose.msra.mxu0 0.0
        %858 = vmatprep.subr.mxu0 0.0
        %859 = vmatpush2.xpose.msra.mxu0 0.0
        %860 = vmatprep.subr.mxu0 0.0
        %861 = vmatpush2.xpose.msra.mxu0 0.0
        %862 = vmatprep.subr.mxu0 0.0
        %863 = vmatpush2.xpose.msra.mxu0 0.0
        %864 = vmatprep.subr.mxu0 0.0
        %865 = vmatpush2.xpose.msra.mxu0 0.0
        %866 = vmatprep.subr.mxu0 0.0
        %867 = vmatpush2.xpose.msra.mxu0 0.0
        %868 = vmatprep.subr.mxu0 0.0
        %869 = vmatpush2.xpose.msra.mxu0 0.0
        %870 = vmatprep.subr.mxu0 0.0
        %871 = vmatpush2.xpose.msra.mxu0 0.0
        %872 = vmatprep.subr.mxu0 0.0
        %873 = vmatpush2.xpose.msra.mxu0 0.0
        %874 = vmatprep.subr.mxu0 0.0
        %875 = vmatpush2.xpose.msra.mxu0 0.0
        %876 = vmatprep.subr.mxu0 0.0
        %877 = vmatpush2.xpose.msra.mxu0 0.0
        %878 = vmatprep.mubr.f32.mxu0 0.0
        %879 = vmatmul.mubr.f32.gmra.mxu0 %v809
        %v880 = vpop.f32.mrf.mxu0
        %v881 = vadd.f32 0.0, %v880
        %v882 = vpop.f32.mrf.mxu0
        %883 = vdwg.mxu0
        %v885 = vsel %vm655, %v643, 0
        %v888 = vsel %vm655, %v647, 0
        %890 = vmatprep.subr.mxu0 0.0
        %891 = vmatpush1.xpose.msra.mxu0 0.0
        %892 = vmatprep.subr.mxu0 0.0
        %893 = vmatpush1.xpose.msra.mxu0 0.0
        %894 = vmatprep.subr.mxu0 0.0
        %895 = vmatpush1.xpose.msra.mxu0 0.0
        %896 = vmatprep.subr.mxu0 0.0
        %897 = vmatpush1.xpose.msra.mxu0 0.0
        %898 = vmatprep.subr.mxu0 0.0
        %899 = vmatpush1.xpose.msra.mxu0 0.0
        %900 = vmatprep.subr.mxu0 0.0
        %901 = vmatpush1.xpose.msra.mxu0 0.0
        %902 = vmatprep.subr.mxu0 0.0
        %903 = vmatpush1.xpose.msra.mxu0 0.0
        %904 = vmatprep.subr.mxu0 0.0
        %905 = vmatpush1.xpose.msra.mxu0 0.0
        %906 = vmatprep.subr.mxu0 0.0
        %907 = vmatpush1.xpose.msra.mxu0 0.0
        %908 = vmatprep.subr.mxu0 0.0
        %909 = vmatpush1.xpose.msra.mxu0 0.0
        %910 = vmatprep.subr.mxu0 0.0
        %911 = vmatpush1.xpose.msra.mxu0 0.0
        %912 = vmatprep.subr.mxu0 0.0
        %913 = vmatpush1.xpose.msra.mxu0 0.0
        %914 = vmatprep.subr.mxu0 0.0
        %915 = vmatpush1.xpose.msra.mxu0 0.0
        %916 = vmatprep.subr.mxu0 0.0
        %917 = vmatpush1.xpose.msra.mxu0 0.0
        %918 = vmatprep.subr.mxu0 0.0
        %919 = vmatpush1.xpose.msra.mxu0 0.0
        %920 = vmatprep.subr.mxu0 0.0
        %921 = vmatpush1.xpose.msra.mxu0 %v888
        %922 = vmatprep.subr.mxu0 0.0
        %923 = vmatpush2.xpose.msra.mxu0 0.0
        %924 = vmatprep.subr.mxu0 0.0
        %925 = vmatpush2.xpose.msra.mxu0 0.0
        %926 = vmatprep.subr.mxu0 0.0
        %927 = vmatpush2.xpose.msra.mxu0 0.0
        %928 = vmatprep.subr.mxu0 0.0
        %929 = vmatpush2.xpose.msra.mxu0 0.0
        %930 = vmatprep.subr.mxu0 0.0
        %931 = vmatpush2.xpose.msra.mxu0 0.0
        %932 = vmatprep.subr.mxu0 0.0
        %933 = vmatpush2.xpose.msra.mxu0 0.0
        %934 = vmatprep.subr.mxu0 0.0
        %935 = vmatpush2.xpose.msra.mxu0 0.0
        %936 = vmatprep.subr.mxu0 0.0
        %937 = vmatpush2.xpose.msra.mxu0 0.0
        %938 = vmatprep.subr.mxu0 0.0
        %939 = vmatpush2.xpose.msra.mxu0 0.0
        %940 = vmatprep.subr.mxu0 0.0
        %941 = vmatpush2.xpose.msra.mxu0 0.0
        %942 = vmatprep.subr.mxu0 0.0
        %943 = vmatpush2.xpose.msra.mxu0 0.0
        %944 = vmatprep.subr.mxu0 0.0
        %945 = vmatpush2.xpose.msra.mxu0 0.0
        %946 = vmatprep.subr.mxu0 0.0
        %947 = vmatpush2.xpose.msra.mxu0 0.0
        %948 = vmatprep.subr.mxu0 0.0
        %949 = vmatpush2.xpose.msra.mxu0 0.0
        %950 = vmatprep.subr.mxu0 0.0
        %951 = vmatpush2.xpose.msra.mxu0 0.0
        %952 = vmatprep.subr.mxu0 0.0
        %953 = vmatpush2.xpose.msra.mxu0 0.0
        %954 = vmatprep.mubr.f32.mxu0 0.0
        %955 = vmatmul.mubr.f32.gmra.mxu0 %v885
        %v956 = vpop.f32.mrf.mxu0
        %v957 = vadd.f32 0.0, %v956
        %v958 = vpop.f32.mrf.mxu0
        %959 = vdwg.mxu0
        %v960 = vsel %vm654, 1, 0
        %v961 = vlaneseq
        %v962 = vshrl.u32 %v961, 7
        %v963 = vsub.s32 0, %v962
        %v964 = vrot.slane %v960, %v963
        %vm965 = vcmp.eq.s32.totalorder %v964, 1
        %v966 = vsel %vm965, -1e+09, %v729
        %v967 = vsel %vm965, -1e+09, %v805
        %v968 = vsel %vm965, -1e+09, %v881
        %v969 = vsel %vm965, -1e+09, %v957
        %v970 = vsel %vm655, %v966, -inf
        %971 = vmax.xlane.f32.xlu0 %v970
        %v972 = vpop.xlane.xlu0 %971
        %v973 = vsel %vm655, %v967, -inf
        %974 = vmax.xlane.f32.xlu0 %v973
        %v975 = vpop.xlane.xlu0 %974
        %v976 = vsel %vm655, %v968, -inf
        %977 = vmax.xlane.f32.xlu0 %v976
        %v978 = vpop.xlane.xlu0 %977
        %v979 = vsel %vm655, %v969, -inf
        %980 = vmax.xlane.f32.xlu0 %v979
        %v981 = vpop.xlane.xlu0 %980
        %v982 = vsub.f32 %v966, %v972
        %v983 = vsub.f32 %v967, %v975
        %v984 = vsub.f32 %v968, %v978
        %v985 = vsub.f32 %v969, %v981
        %v986 = vmul.f32 %v982, 1.442695
        %v987 = vpow.pop %v986
        %v988 = vmul.f32 %v983, 1.442695
        %v989 = vpow.pop %v988
        %v990 = vmul.f32 %v984, 1.442695
        %v991 = vpow.pop %v990
        %v992 = vmul.f32 %v985, 1.442695
        %v993 = vpow.pop %v992
        %v994 = vsel %vm655, %v987, 0.0
        %995 = vadd.xlane.f32.xlu0 %v994
        %v996 = vpop.xlane.xlu0 %995
        %v997 = vsel %vm655, %v989, 0.0
        %998 = vadd.xlane.f32.xlu0 %v997
        %v999 = vpop.xlane.xlu0 %998
        %v1000 = vsel %vm655, %v991, 0.0
        %1001 = vadd.xlane.f32.xlu0 %v1000
        %v1002 = vpop.xlane.xlu0 %1001
        %v1003 = vsel %vm655, %v993, 0.0
        %1004 = vadd.xlane.f32.xlu0 %v1003
        %v1005 = vpop.xlane.xlu0 %1004
        %v1006 = vrcp.pop %v996
        %v1007 = vmul.f32 %v987, %v1006
        %v1008 = vrcp.pop %v999
        %v1009 = vmul.f32 %v989, %v1008
        %v1010 = vrcp.pop %v1002
        %v1011 = vmul.f32 %v991, %v1010
        %v1012 = vrcp.pop %v1005
        %v1013 = vmul.f32 %v993, %v1012
        %1014 = vst.msk [vmem:[%s611] sm:$0xff] %vm655, %v1007
        %1015 = vst.msk [vmem:[%s611 + $0x8] sm:$0xff] %vm655, %v1009
        %1016 = vst.msk [vmem:[%s611 + $0x10] sm:$0xff] %vm655, %v1011
        %1017 = vst.msk [vmem:[%s611 + $0x18] sm:$0xff] %vm655, %v1013
        %v1019 = vsel %vm655, %v966, 0
        %1021 = vmatprep.subr.mxu0 0.0
        %1022 = vmatpush1.msra.mxu0 0.0
        %1023 = vmatprep.subr.mxu0 0.0
        %1024 = vmatpush1.msra.mxu0 0.0
        %1025 = vmatprep.subr.mxu0 0.0
        %1026 = vmatpush1.msra.mxu0 0.0
        %1027 = vmatprep.subr.mxu0 0.0
        %1028 = vmatpush1.msra.mxu0 0.0
        %1029 = vmatprep.subr.mxu0 0.0
        %1030 = vmatpush1.msra.mxu0 0.0
        %1031 = vmatprep.subr.mxu0 0.0
        %1032 = vmatpush1.msra.mxu0 0.0
        %1033 = vmatprep.subr.mxu0 0.0
        %1034 = vmatpush1.msra.mxu0 0.0
        %1035 = vmatprep.subr.mxu0 0.0
        %1036 = vmatpush1.msra.mxu0 0.0
        %1037 = vmatprep.subr.mxu0 0.0
        %1038 = vmatpush1.msra.mxu0 0.0
        %1039 = vmatprep.subr.mxu0 0.0
        %1040 = vmatpush1.msra.mxu0 0.0
        %1041 = vmatprep.subr.mxu0 0.0
        %1042 = vmatpush1.msra.mxu0 0.0
        %1043 = vmatprep.subr.mxu0 0.0
        %1044 = vmatpush1.msra.mxu0 0.0
        %1045 = vmatprep.subr.mxu0 0.0
        %1046 = vmatpush1.msra.mxu0 0.0
        %1047 = vmatprep.subr.mxu0 0.0
        %1048 = vmatpush1.msra.mxu0 0.0
        %1049 = vmatprep.subr.mxu0 0.0
        %1050 = vmatpush1.msra.mxu0 0.0
        %1051 = vmatprep.subr.mxu0 0.0
        %1052 = vmatpush1.msra.mxu0 %v648
        %1053 = vmatprep.subr.mxu0 0.0
        %1054 = vmatpush2.msra.mxu0 0.0
        %1055 = vmatprep.subr.mxu0 0.0
        %1056 = vmatpush2.msra.mxu0 0.0
        %1057 = vmatprep.subr.mxu0 0.0
        %1058 = vmatpush2.msra.mxu0 0.0
        %1059 = vmatprep.subr.mxu0 0.0
        %1060 = vmatpush2.msra.mxu0 0.0
        %1061 = vmatprep.subr.mxu0 0.0
        %1062 = vmatpush2.msra.mxu0 0.0
        %1063 = vmatprep.subr.mxu0 0.0
        %1064 = vmatpush2.msra.mxu0 0.0
        %1065 = vmatprep.subr.mxu0 0.0
        %1066 = vmatpush2.msra.mxu0 0.0
        %1067 = vmatprep.subr.mxu0 0.0
        %1068 = vmatpush2.msra.mxu0 0.0
        %1069 = vmatprep.subr.mxu0 0.0
        %1070 = vmatpush2.msra.mxu0 0.0
        %1071 = vmatprep.subr.mxu0 0.0
        %1072 = vmatpush2.msra.mxu0 0.0
        %1073 = vmatprep.subr.mxu0 0.0
        %1074 = vmatpush2.msra.mxu0 0.0
        %1075 = vmatprep.subr.mxu0 0.0
        %1076 = vmatpush2.msra.mxu0 0.0
        %1077 = vmatprep.subr.mxu0 0.0
        %1078 = vmatpush2.msra.mxu0 0.0
        %1079 = vmatprep.subr.mxu0 0.0
        %1080 = vmatpush2.msra.mxu0 0.0
        %1081 = vmatprep.subr.mxu0 0.0
        %1082 = vmatpush2.msra.mxu0 0.0
        %1083 = vmatprep.subr.mxu0 0.0
        %1084 = vmatpush2.msra.mxu0 0.0
        %1085 = vmatprep.mubr.f32.mxu0 0.0
        %1086 = vmatmul.mubr.f32.gmra.mxu0 %v1019
        %v1087 = vpop.f32.mrf.mxu0
        %v1088 = vadd.f32 0.0, %v1087
        %v1089 = vpop.f32.mrf.mxu0
        %1090 = vdwg.mxu0
        %v1092 = vsel %vm655, %v967, 0
        %1094 = vmatprep.subr.mxu0 0.0
        %1095 = vmatpush1.msra.mxu0 0.0
        %1096 = vmatprep.subr.mxu0 0.0
        %1097 = vmatpush1.msra.mxu0 0.0
        %1098 = vmatprep.subr.mxu0 0.0
        %1099 = vmatpush1.msra.mxu0 0.0
        %1100 = vmatprep.subr.mxu0 0.0
        %1101 = vmatpush1.msra.mxu0 0.0
        %1102 = vmatprep.subr.mxu0 0.0
        %1103 = vmatpush1.msra.mxu0 0.0
        %1104 = vmatprep.subr.mxu0 0.0
        %1105 = vmatpush1.msra.mxu0 0.0
        %1106 = vmatprep.subr.mxu0 0.0
        %1107 = vmatpush1.msra.mxu0 0.0
        %1108 = vmatprep.subr.mxu0 0.0
        %1109 = vmatpush1.msra.mxu0 0.0
        %1110 = vmatprep.subr.mxu0 0.0
        %1111 = vmatpush1.msra.mxu0 0.0
        %1112 = vmatprep.subr.mxu0 0.0
        %1113 = vmatpush1.msra.mxu0 0.0
        %1114 = vmatprep.subr.mxu0 0.0
        %1115 = vmatpush1.msra.mxu0 0.0
        %1116 = vmatprep.subr.mxu0 0.0
        %1117 = vmatpush1.msra.mxu0 0.0
        %1118 = vmatprep.subr.mxu0 0.0
        %1119 = vmatpush1.msra.mxu0 0.0
        %1120 = vmatprep.subr.mxu0 0.0
        %1121 = vmatpush1.msra.mxu0 0.0
        %1122 = vmatprep.subr.mxu0 0.0
        %1123 = vmatpush1.msra.mxu0 0.0
        %1124 = vmatprep.subr.mxu0 0.0
        %1125 = vmatpush1.msra.mxu0 %v649
        %1126 = vmatprep.subr.mxu0 0.0
        %1127 = vmatpush2.msra.mxu0 0.0
        %1128 = vmatprep.subr.mxu0 0.0
        %1129 = vmatpush2.msra.mxu0 0.0
        %1130 = vmatprep.subr.mxu0 0.0
        %1131 = vmatpush2.msra.mxu0 0.0
        %1132 = vmatprep.subr.mxu0 0.0
        %1133 = vmatpush2.msra.mxu0 0.0
        %1134 = vmatprep.subr.mxu0 0.0
        %1135 = vmatpush2.msra.mxu0 0.0
        %1136 = vmatprep.subr.mxu0 0.0
        %1137 = vmatpush2.msra.mxu0 0.0
        %1138 = vmatprep.subr.mxu0 0.0
        %1139 = vmatpush2.msra.mxu0 0.0
        %1140 = vmatprep.subr.mxu0 0.0
        %1141 = vmatpush2.msra.mxu0 0.0
        %1142 = vmatprep.subr.mxu0 0.0
        %1143 = vmatpush2.msra.mxu0 0.0
        %1144 = vmatprep.subr.mxu0 0.0
        %1145 = vmatpush2.msra.mxu0 0.0
        %1146 = vmatprep.subr.mxu0 0.0
        %1147 = vmatpush2.msra.mxu0 0.0
        %1148 = vmatprep.subr.mxu0 0.0
        %1149 = vmatpush2.msra.mxu0 0.0
        %1150 = vmatprep.subr.mxu0 0.0
        %1151 = vmatpush2.msra.mxu0 0.0
        %1152 = vmatprep.subr.mxu0 0.0
        %1153 = vmatpush2.msra.mxu0 0.0
        %1154 = vmatprep.subr.mxu0 0.0
        %1155 = vmatpush2.msra.mxu0 0.0
        %1156 = vmatprep.subr.mxu0 0.0
        %1157 = vmatpush2.msra.mxu0 0.0
        %1158 = vmatprep.mubr.f32.mxu0 0.0
        %1159 = vmatmul.mubr.f32.gmra.mxu0 %v1092
        %v1160 = vpop.f32.mrf.mxu0
        %v1161 = vadd.f32 0.0, %v1160
        %v1162 = vpop.f32.mrf.mxu0
        %1163 = vdwg.mxu0
        %v1165 = vsel %vm655, %v968, 0
        %1167 = vmatprep.subr.mxu0 0.0
        %1168 = vmatpush1.msra.mxu0 0.0
        %1169 = vmatprep.subr.mxu0 0.0
        %1170 = vmatpush1.msra.mxu0 0.0
        %1171 = vmatprep.subr.mxu0 0.0
        %1172 = vmatpush1.msra.mxu0 0.0
        %1173 = vmatprep.subr.mxu0 0.0
        %1174 = vmatpush1.msra.mxu0 0.0
        %1175 = vmatprep.subr.mxu0 0.0
        %1176 = vmatpush1.msra.mxu0 0.0
        %1177 = vmatprep.subr.mxu0 0.0
        %1178 = vmatpush1.msra.mxu0 0.0
        %1179 = vmatprep.subr.mxu0 0.0
        %1180 = vmatpush1.msra.mxu0 0.0
        %1181 = vmatprep.subr.mxu0 0.0
        %1182 = vmatpush1.msra.mxu0 0.0
        %1183 = vmatprep.subr.mxu0 0.0
        %1184 = vmatpush1.msra.mxu0 0.0
        %1185 = vmatprep.subr.mxu0 0.0
        %1186 = vmatpush1.msra.mxu0 0.0
        %1187 = vmatprep.subr.mxu0 0.0
        %1188 = vmatpush1.msra.mxu0 0.0
        %1189 = vmatprep.subr.mxu0 0.0
        %1190 = vmatpush1.msra.mxu0 0.0
        %1191 = vmatprep.subr.mxu0 0.0
        %1192 = vmatpush1.msra.mxu0 0.0
        %1193 = vmatprep.subr.mxu0 0.0
        %1194 = vmatpush1.msra.mxu0 0.0
        %1195 = vmatprep.subr.mxu0 0.0
        %1196 = vmatpush1.msra.mxu0 0.0
        %1197 = vmatprep.subr.mxu0 0.0
        %1198 = vmatpush1.msra.mxu0 %v650
        %1199 = vmatprep.subr.mxu0 0.0
        %1200 = vmatpush2.msra.mxu0 0.0
        %1201 = vmatprep.subr.mxu0 0.0
        %1202 = vmatpush2.msra.mxu0 0.0
        %1203 = vmatprep.subr.mxu0 0.0
        %1204 = vmatpush2.msra.mxu0 0.0
        %1205 = vmatprep.subr.mxu0 0.0
        %1206 = vmatpush2.msra.mxu0 0.0
        %1207 = vmatprep.subr.mxu0 0.0
        %1208 = vmatpush2.msra.mxu0 0.0
        %1209 = vmatprep.subr.mxu0 0.0
        %1210 = vmatpush2.msra.mxu0 0.0
        %1211 = vmatprep.subr.mxu0 0.0
        %1212 = vmatpush2.msra.mxu0 0.0
        %1213 = vmatprep.subr.mxu0 0.0
        %1214 = vmatpush2.msra.mxu0 0.0
        %1215 = vmatprep.subr.mxu0 0.0
        %1216 = vmatpush2.msra.mxu0 0.0
        %1217 = vmatprep.subr.mxu0 0.0
        %1218 = vmatpush2.msra.mxu0 0.0
        %1219 = vmatprep.subr.mxu0 0.0
        %1220 = vmatpush2.msra.mxu0 0.0
        %1221 = vmatprep.subr.mxu0 0.0
        %1222 = vmatpush2.msra.mxu0 0.0
        %1223 = vmatprep.subr.mxu0 0.0
        %1224 = vmatpush2.msra.mxu0 0.0
        %1225 = vmatprep.subr.mxu0 0.0
        %1226 = vmatpush2.msra.mxu0 0.0
        %1227 = vmatprep.subr.mxu0 0.0
        %1228 = vmatpush2.msra.mxu0 0.0
        %1229 = vmatprep.subr.mxu0 0.0
        %1230 = vmatpush2.msra.mxu0 0.0
        %1231 = vmatprep.mubr.f32.mxu0 0.0
        %1232 = vmatmul.mubr.f32.gmra.mxu0 %v1165
        %v1233 = vpop.f32.mrf.mxu0
        %v1234 = vadd.f32 0.0, %v1233
        %v1235 = vpop.f32.mrf.mxu0
        %1236 = vdwg.mxu0
        %v1238 = vsel %vm655, %v969, 0
        %1240 = vmatprep.subr.mxu0 0.0
        %1241 = vmatpush1.msra.mxu0 0.0
        %1242 = vmatprep.subr.mxu0 0.0
        %1243 = vmatpush1.msra.mxu0 0.0
        %1244 = vmatprep.subr.mxu0 0.0
        %1245 = vmatpush1.msra.mxu0 0.0
        %1246 = vmatprep.subr.mxu0 0.0
        %1247 = vmatpush1.msra.mxu0 0.0
        %1248 = vmatprep.subr.mxu0 0.0
        %1249 = vmatpush1.msra.mxu0 0.0
        %1250 = vmatprep.subr.mxu0 0.0
        %1251 = vmatpush1.msra.mxu0 0.0
        %1252 = vmatprep.subr.mxu0 0.0
        %1253 = vmatpush1.msra.mxu0 0.0
        %1254 = vmatprep.subr.mxu0 0.0
        %1255 = vmatpush1.msra.mxu0 0.0
        %1256 = vmatprep.subr.mxu0 0.0
        %1257 = vmatpush1.msra.mxu0 0.0
        %1258 = vmatprep.subr.mxu0 0.0
        %1259 = vmatpush1.msra.mxu0 0.0
        %1260 = vmatprep.subr.mxu0 0.0
        %1261 = vmatpush1.msra.mxu0 0.0
        %1262 = vmatprep.subr.mxu0 0.0
        %1263 = vmatpush1.msra.mxu0 0.0
        %1264 = vmatprep.subr.mxu0 0.0
        %1265 = vmatpush1.msra.mxu0 0.0
        %1266 = vmatprep.subr.mxu0 0.0
        %1267 = vmatpush1.msra.mxu0 0.0
        %1268 = vmatprep.subr.mxu0 0.0
        %1269 = vmatpush1.msra.mxu0 0.0
        %1270 = vmatprep.subr.mxu0 0.0
        %1271 = vmatpush1.msra.mxu0 %v651
        %1272 = vmatprep.subr.mxu0 0.0
        %1273 = vmatpush2.msra.mxu0 0.0
        %1274 = vmatprep.subr.mxu0 0.0
        %1275 = vmatpush2.msra.mxu0 0.0
        %1276 = vmatprep.subr.mxu0 0.0
        %1277 = vmatpush2.msra.mxu0 0.0
        %1278 = vmatprep.subr.mxu0 0.0
        %1279 = vmatpush2.msra.mxu0 0.0
        %1280 = vmatprep.subr.mxu0 0.0
        %1281 = vmatpush2.msra.mxu0 0.0
        %1282 = vmatprep.subr.mxu0 0.0
        %1283 = vmatpush2.msra.mxu0 0.0
        %1284 = vmatprep.subr.mxu0 0.0
        %1285 = vmatpush2.msra.mxu0 0.0
        %1286 = vmatprep.subr.mxu0 0.0
        %1287 = vmatpush2.msra.mxu0 0.0
        %1288 = vmatprep.subr.mxu0 0.0
        %1289 = vmatpush2.msra.mxu0 0.0
        %1290 = vmatprep.subr.mxu0 0.0
        %1291 = vmatpush2.msra.mxu0 0.0
        %1292 = vmatprep.subr.mxu0 0.0
        %1293 = vmatpush2.msra.mxu0 0.0
        %1294 = vmatprep.subr.mxu0 0.0
        %1295 = vmatpush2.msra.mxu0 0.0
        %1296 = vmatprep.subr.mxu0 0.0
        %1297 = vmatpush2.msra.mxu0 0.0
        %1298 = vmatprep.subr.mxu0 0.0
        %1299 = vmatpush2.msra.mxu0 0.0
        %1300 = vmatprep.subr.mxu0 0.0
        %1301 = vmatpush2.msra.mxu0 0.0
        %1302 = vmatprep.subr.mxu0 0.0
        %1303 = vmatpush2.msra.mxu0 0.0
        %1304 = vmatprep.mubr.f32.mxu0 0.0
        %1305 = vmatmul.mubr.f32.gmra.mxu0 %v1238
        %v1306 = vpop.f32.mrf.mxu0
        %v1307 = vadd.f32 0.0, %v1306
        %v1308 = vpop.f32.mrf.mxu0
        %1309 = vdwg.mxu0
        %1310 = vst.msk [vmem:[#allocation2] sm:$0xff] %vm655, %v1088
        %1312 = vrot.lane.b32.xlu0 %v1161, 8
        %v1313 = vpop.permute.xlu0 %1312
        %vm1315 = vcmask 130112
        %1316 = vst.msk [vmem:[#allocation2] sm:$0xff] %vm1315, %v1313
        %1318 = vrot.lane.b32.xlu0 %v1234, 16
        %v1319 = vpop.permute.xlu0 %1318
        %vm1321 = vcmask 195712
        %1322 = vst.msk [vmem:[#allocation2] sm:$0xff] %vm1321, %v1319
        %1324 = vrot.lane.b32.xlu0 %v1307, 24
        %v1325 = vpop.permute.xlu0 %1324
        %vm1327 = vcmask 261312
        %1328 = vst.msk [vmem:[#allocation2] sm:$0xff] %vm1327, %v1325
        %v1329 = vld [vmem:[#allocation2] sm:$0xff]
        %v1330 = vld [vmem:[%s5] sm:$0xff]
        %v1331 = vld [vmem:[%s5 + $0x8] sm:$0xff]
        %v1332 = vld [vmem:[%s5 + $0x10] sm:$0xff]
        %v1333 = vld [vmem:[%s5 + $0x18] sm:$0xff]
        %v1334 = vld [vmem:[%s6] sm:$0x1]
        %v1336 = vlaneseq
        %v1337 = vshrl.u32 %v1336, 7
        %v1338 = vsub.s32 0, %v1337
        %v1339 = vrot.slane %v1334, %v1338
        %vm1341 = vcmask 261120
        %v1343 = vsel %vm1341, %v1329, 0
        %1345 = vmatprep.subr.mxu0 0.0
        %1346 = vmatpush1.msra.mxu0 0.0
        %1347 = vmatprep.subr.mxu0 0.0
        %1348 = vmatpush1.msra.mxu0 0.0
        %1349 = vmatprep.subr.mxu0 0.0
        %1350 = vmatpush1.msra.mxu0 0.0
        %1351 = vmatprep.subr.mxu0 0.0
        %1352 = vmatpush1.msra.mxu0 0.0
        %1353 = vmatprep.subr.mxu0 0.0
        %1354 = vmatpush1.msra.mxu0 0.0
        %1355 = vmatprep.subr.mxu0 0.0
        %1356 = vmatpush1.msra.mxu0 0.0
        %1357 = vmatprep.subr.mxu0 0.0
        %1358 = vmatpush1.msra.mxu0 0.0
        %1359 = vmatprep.subr.mxu0 0.0
        %1360 = vmatpush1.msra.mxu0 0.0
        %1361 = vmatprep.subr.mxu0 0.0
        %1362 = vmatpush1.msra.mxu0 0.0
        %1363 = vmatprep.subr.mxu0 0.0
        %1364 = vmatpush1.msra.mxu0 0.0
        %1365 = vmatprep.subr.mxu0 0.0
        %1366 = vmatpush1.msra.mxu0 0.0
        %1367 = vmatprep.subr.mxu0 0.0
        %1368 = vmatpush1.msra.mxu0 0.0
        %1369 = vmatprep.subr.mxu0 0.0
        %1370 = vmatpush1.msra.mxu0 %v1333
        %1371 = vmatprep.subr.mxu0 0.0
        %1372 = vmatpush1.msra.mxu0 %v1332
        %1373 = vmatprep.subr.mxu0 0.0
        %1374 = vmatpush1.msra.mxu0 %v1331
        %1375 = vmatprep.subr.mxu0 0.0
        %1376 = vmatpush1.msra.mxu0 %v1330
        %1377 = vmatprep.subr.mxu0 0.0
        %1378 = vmatpush2.msra.mxu0 0.0
        %1379 = vmatprep.subr.mxu0 0.0
        %1380 = vmatpush2.msra.mxu0 0.0
        %1381 = vmatprep.subr.mxu0 0.0
        %1382 = vmatpush2.msra.mxu0 0.0
        %1383 = vmatprep.subr.mxu0 0.0
        %1384 = vmatpush2.msra.mxu0 0.0
        %1385 = vmatprep.subr.mxu0 0.0
        %1386 = vmatpush2.msra.mxu0 0.0
        %1387 = vmatprep.subr.mxu0 0.0
        %1388 = vmatpush2.msra.mxu0 0.0
        %1389 = vmatprep.subr.mxu0 0.0
        %1390 = vmatpush2.msra.mxu0 0.0
        %1391 = vmatprep.subr.mxu0 0.0
        %1392 = vmatpush2.msra.mxu0 0.0
        %1393 = vmatprep.subr.mxu0 0.0
        %1394 = vmatpush2.msra.mxu0 0.0
        %1395 = vmatprep.subr.mxu0 0.0
        %1396 = vmatpush2.msra.mxu0 0.0
        %1397 = vmatprep.subr.mxu0 0.0
        %1398 = vmatpush2.msra.mxu0 0.0
        %1399 = vmatprep.subr.mxu0 0.0
        %1400 = vmatpush2.msra.mxu0 0.0
        %1401 = vmatprep.subr.mxu0 0.0
        %1402 = vmatpush2.msra.mxu0 0.0
        %1403 = vmatprep.subr.mxu0 0.0
        %1404 = vmatpush2.msra.mxu0 0.0
        %1405 = vmatprep.subr.mxu0 0.0
        %1406 = vmatpush2.msra.mxu0 0.0
        %1407 = vmatprep.subr.mxu0 0.0
        %1408 = vmatpush2.msra.mxu0 0.0
        %1409 = vmatprep.mubr.f32.mxu0 0.0
        %1410 = vmatmul.mubr.f32.gmra.mxu0 %v1343
        %v1411 = vpop.f32.mrf.mxu0
        %v1412 = vadd.f32 %v1339, %v1411
        %v1413 = vpop.f32.mrf.mxu0
        %1414 = vdwg.mxu0
        %v1415 = vadd.f32 %v1412, %v652
        %v1416 = vsel %vm1341, %v1415, 0.0
        %1417 = vadd.xlane.f32.xlu0 %v1416
        %v1418 = vpop.xlane.xlu0 %1417
        %v1419 = vrcp.pop 32.0
        %v1420 = vmul.f32 %v1418, %v1419
        %v1421 = vsub.f32 %v1415, %v1420
        %v1422 = vmul.f32 %v1421, %v1421
        %v1423 = vsel %vm1341, %v1422, 0.0
        %1424 = vadd.xlane.f32.xlu0 %v1423
        %v1425 = vpop.xlane.xlu0 %1424
        %v1426 = vmul.f32 %v1425, %v1419
        %v1427 = vadd.f32 %v1426, 1e-05
        %v1428 = vrsqrt.pop %v1427
        %v1429 = vmul.f32 %v1421, %v1428
        %v1430 = vld [vmem:[%s7] sm:$0x1]
        %v1432 = vlaneseq
        %v1433 = vshrl.u32 %v1432, 7
        %v1434 = vsub.s32 0, %v1433
        %v1435 = vrot.slane %v1430, %v1434
        %v1437 = vmul.f32 %v1429, %v1435
        %v1438 = vld [vmem:[%s8] sm:$0x1]
        %v1440 = vlaneseq
        %v1441 = vshrl.u32 %v1440, 7
        %v1442 = vsub.s32 0, %v1441
        %v1443 = vrot.slane %v1438, %v1442
        %v1445 = vadd.f32 %v1437, %v1443
        %v1446 = vld [vmem:[%s9] sm:$0xff]
        %v1447 = vld [vmem:[%s9 + $0x8] sm:$0xff]
        %v1448 = vld [vmem:[%s9 + $0x10] sm:$0xff]
        %v1449 = vld [vmem:[%s9 + $0x18] sm:$0xff]
        %v1450 = vld [vmem:[%s10] sm:$0x1]
        %v1452 = vlaneseq
        %v1453 = vshrl.u32 %v1452, 7
        %v1454 = vsub.s32 0, %v1453
        %v1455 = vrot.slane %v1450, %v1454
        %v1458 = vsel %vm1341, %v1445, 0
        %1460 = vmatprep.subr.mxu0 0.0
        %1461 = vmatpush1.msra.mxu0 0.0
        %1462 = vmatprep.subr.mxu0 0.0
        %1463 = vmatpush1.msra.mxu0 0.0
        %1464 = vmatprep.subr.mxu0 0.0
        %1465 = vmatpush1.msra.mxu0 0.0
        %1466 = vmatprep.subr.mxu0 0.0
        %1467 = vmatpush1.msra.mxu0 0.0
        %1468 = vmatprep.subr.mxu0 0.0
        %1469 = vmatpush1.msra.mxu0 0.0
        %1470 = vmatprep.subr.mxu0 0.0
        %1471 = vmatpush1.msra.mxu0 0.0
        %1472 = vmatprep.subr.mxu0 0.0
        %1473 = vmatpush1.msra.mxu0 0.0
        %1474 = vmatprep.subr.mxu0 0.0
        %1475 = vmatpush1.msra.mxu0 0.0
        %1476 = vmatprep.subr.mxu0 0.0
        %1477 = vmatpush1.msra.mxu0 0.0
        %1478 = vmatprep.subr.mxu0 0.0
        %1479 = vmatpush1.msra.mxu0 0.0
        %1480 = vmatprep.subr.mxu0 0.0
        %1481 = vmatpush1.msra.mxu0 0.0
        %1482 = vmatprep.subr.mxu0 0.0
        %1483 = vmatpush1.msra.mxu0 0.0
        %1484 = vmatprep.subr.mxu0 0.0
        %1485 = vmatpush1.msra.mxu0 %v1449
        %1486 = vmatprep.subr.mxu0 0.0
        %1487 = vmatpush1.msra.mxu0 %v1448
        %1488 = vmatprep.subr.mxu0 0.0
        %1489 = vmatpush1.msra.mxu0 %v1447
        %1490 = vmatprep.subr.mxu0 0.0
        %1491 = vmatpush1.msra.mxu0 %v1446
        %1492 = vmatprep.subr.mxu0 0.0
        %1493 = vmatpush2.msra.mxu0 0.0
        %1494 = vmatprep.subr.mxu0 0.0
        %1495 = vmatpush2.msra.mxu0 0.0
        %1496 = vmatprep.subr.mxu0 0.0
        %1497 = vmatpush2.msra.mxu0 0.0
        %1498 = vmatprep.subr.mxu0 0.0
        %1499 = vmatpush2.msra.mxu0 0.0
        %1500 = vmatprep.subr.mxu0 0.0
        %1501 = vmatpush2.msra.mxu0 0.0
        %1502 = vmatprep.subr.mxu0 0.0
        %1503 = vmatpush2.msra.mxu0 0.0
        %1504 = vmatprep.subr.mxu0 0.0
        %1505 = vmatpush2.msra.mxu0 0.0
        %1506 = vmatprep.subr.mxu0 0.0
        %1507 = vmatpush2.msra.mxu0 0.0
        %1508 = vmatprep.subr.mxu0 0.0
        %1509 = vmatpush2.msra.mxu0 0.0
        %1510 = vmatprep.subr.mxu0 0.0
        %1511 = vmatpush2.msra.mxu0 0.0
        %1512 = vmatprep.subr.mxu0 0.0
        %1513 = vmatpush2.msra.mxu0 0.0
        %1514 = vmatprep.subr.mxu0 0.0
        %1515 = vmatpush2.msra.mxu0 0.0
        %1516 = vmatprep.subr.mxu0 0.0
        %1517 = vmatpush2.msra.mxu0 0.0
        %1518 = vmatprep.subr.mxu0 0.0
        %1519 = vmatpush2.msra.mxu0 0.0
        %1520 = vmatprep.subr.mxu0 0.0
        %1521 = vmatpush2.msra.mxu0 0.0
        %1522 = vmatprep.subr.mxu0 0.0
        %1523 = vmatpush2.msra.mxu0 0.0
        %1524 = vmatprep.mubr.f32.mxu0 0.0
        %1525 = vmatmul.mubr.f32.gmra.mxu0 %v1458
        %v1526 = vpop.f32.mrf.mxu0
        %v1527 = vadd.f32 %v1455, %v1526
        %v1528 = vpop.f32.mrf.mxu0
        %1529 = vdwg.mxu0
        %v1530 = vmax.f32 %v1527, 0.0
        %v1531 = vld [vmem:[%s11] sm:$0xff]
        %v1532 = vld [vmem:[%s11 + $0x8] sm:$0xff]
        %v1533 = vld [vmem:[%s11 + $0x10] sm:$0xff]
        %v1534 = vld [vmem:[%s11 + $0x18] sm:$0xff]
        %v1535 = vld [vmem:[%s11 + $0x20] sm:$0xff]
        %v1536 = vld [vmem:[%s11 + $0x28] sm:$0xff]
        %v1537 = vld [vmem:[%s11 + $0x30] sm:$0xff]
        %v1538 = vld [vmem:[%s11 + $0x38] sm:$0xff]
        %v1539 = vld [vmem:[%s12] sm:$0x1]
        %v1541 = vlaneseq
        %v1542 = vshrl.u32 %v1541, 7
        %v1543 = vsub.s32 0, %v1542
        %v1544 = vrot.slane %v1539, %v1543
        %vm1546 = vcmask 523264
        %v1548 = vsel %vm1546, %v1530, 0
        %1550 = vmatprep.subr.mxu0 0.0
        %1551 = vmatpush1.msra.mxu0 0.0
        %1552 = vmatprep.subr.mxu0 0.0
        %1553 = vmatpush1.msra.mxu0 0.0
        %1554 = vmatprep.subr.mxu0 0.0
        %1555 = vmatpush1.msra.mxu0 0.0
        %1556 = vmatprep.subr.mxu0 0.0
        %1557 = vmatpush1.msra.mxu0 0.0
        %1558 = vmatprep.subr.mxu0 0.0
        %1559 = vmatpush1.msra.mxu0 0.0
        %1560 = vmatprep.subr.mxu0 0.0
        %1561 = vmatpush1.msra.mxu0 0.0
        %1562 = vmatprep.subr.mxu0 0.0
        %1563 = vmatpush1.msra.mxu0 0.0
        %1564 = vmatprep.subr.mxu0 0.0
        %1565 = vmatpush1.msra.mxu0 0.0
        %1566 = vmatprep.subr.mxu0 0.0
        %1567 = vmatpush1.msra.mxu0 %v1538
        %1568 = vmatprep.subr.mxu0 0.0
        %1569 = vmatpush1.msra.mxu0 %v1537
        %1570 = vmatprep.subr.mxu0 0.0
        %1571 = vmatpush1.msra.mxu0 %v1536
        %1572 = vmatprep.subr.mxu0 0.0
        %1573 = vmatpush1.msra.mxu0 %v1535
        %1574 = vmatprep.subr.mxu0 0.0
        %1575 = vmatpush1.msra.mxu0 %v1534
        %1576 = vmatprep.subr.mxu0 0.0
        %1577 = vmatpush1.msra.mxu0 %v1533
        %1578 = vmatprep.subr.mxu0 0.0
        %1579 = vmatpush1.msra.mxu0 %v1532
        %1580 = vmatprep.subr.mxu0 0.0
        %1581 = vmatpush1.msra.mxu0 %v1531
        %1582 = vmatprep.subr.mxu0 0.0
        %1583 = vmatpush2.msra.mxu0 0.0
        %1584 = vmatprep.subr.mxu0 0.0
        %1585 = vmatpush2.msra.mxu0 0.0
        %1586 = vmatprep.subr.mxu0 0.0
        %1587 = vmatpush2.msra.mxu0 0.0
        %1588 = vmatprep.subr.mxu0 0.0
        %1589 = vmatpush2.msra.mxu0 0.0
        %1590 = vmatprep.subr.mxu0 0.0
        %1591 = vmatpush2.msra.mxu0 0.0
        %1592 = vmatprep.subr.mxu0 0.0
        %1593 = vmatpush2.msra.mxu0 0.0
        %1594 = vmatprep.subr.mxu0 0.0
        %1595 = vmatpush2.msra.mxu0 0.0
        %1596 = vmatprep.subr.mxu0 0.0
        %1597 = vmatpush2.msra.mxu0 0.0
        %1598 = vmatprep.subr.mxu0 0.0
        %1599 = vmatpush2.msra.mxu0 0.0
        %1600 = vmatprep.subr.mxu0 0.0
        %1601 = vmatpush2.msra.mxu0 0.0
        %1602 = vmatprep.subr.mxu0 0.0
        %1603 = vmatpush2.msra.mxu0 0.0
        %1604 = vmatprep.subr.mxu0 0.0
        %1605 = vmatpush2.msra.mxu0 0.0
        %1606 = vmatprep.subr.mxu0 0.0
        %1607 = vmatpush2.msra.mxu0 0.0
        %1608 = vmatprep.subr.mxu0 0.0
        %1609 = vmatpush2.msra.mxu0 0.0
        %1610 = vmatprep.subr.mxu0 0.0
        %1611 = vmatpush2.msra.mxu0 0.0
        %1612 = vmatprep.subr.mxu0 0.0
        %1613 = vmatpush2.msra.mxu0 0.0
        %1614 = vmatprep.mubr.f32.mxu0 0.0
        %1615 = vmatmul.mubr.f32.gmra.mxu0 %v1548
        %v1616 = vpop.f32.mrf.mxu0
        %v1617 = vadd.f32 %v1544, %v1616
        %v1618 = vpop.f32.mrf.mxu0
        %1619 = vdwg.mxu0
        %v1620 = vadd.f32 %v1617, %v1445
        %v1621 = vsel %vm1341, %v1620, 0.0
        %1622 = vadd.xlane.f32.xlu0 %v1621
        %v1623 = vpop.xlane.xlu0 %1622
        %v1624 = vmul.f32 %v1623, %v1419
        %v1625 = vmul.f32 %v1620, %v1620
        %v1626 = vsel %vm1341, %v1625, 0.0
        %1627 = vadd.xlane.f32.xlu0 %v1626
        %v1628 = vpop.xlane.xlu0 %1627
        %v1629 = vmul.f32 %v1628, %v1419
        %v1630 = vmul.f32 %v1624, %v1624
        %v1631 = vsub.f32 %v1629, %v1630
        %v1632 = vsub.f32 %v1620, %v1624
        %v1633 = vadd.f32 %v1631, 1e-05
        %v1634 = vrsqrt.pop %v1633
        %v1635 = vmul.f32 %v1632, %v1634
        %v1636 = vld [vmem:[%s13] sm:$0x1]
        %v1638 = vlaneseq
        %v1639 = vshrl.u32 %v1638, 7
        %v1640 = vsub.s32 0, %v1639
        %v1641 = vrot.slane %v1636, %v1640
        %v1643 = vmul.f32 %v1635, %v1641
        %v1644 = vld [vmem:[%s14] sm:$0x1]
        %v1646 = vlaneseq
        %v1647 = vshrl.u32 %v1646, 7
        %v1648 = vsub.s32 0, %v1647
        %v1649 = vrot.slane %v1644, %v1648
        %v1651 = vadd.f32 %v1643, %v1649
        %1652 = vst.msk [vmem:[%s604] sm:$0xff] %vm1341, %v1651
        %s1653 = sand.u32 %s400, 1
        %s1654 = scalar_lea.sflag [#allocation4], %s1653
        %s1655 = sand.u32 %s400, 1
        %s1656 = smul.addr %s1655, 8
        %s1657 = scalar_lea.vmem [#allocation3], %s1656
        %s1658 = sand.u32 %s428, 1
        %s1659 = scalar_lea.sflag [#allocation6], %s1658
        %s1660 = sand.u32 %s428, 1
        %s1661 = smul.addr %s1660, 32
        %s1662 = scalar_lea.vmem [#allocation5], %s1661
        // Predicated region
        $region81: #{encoder_forward.7} parent=79 // pred_check
          %p1663 = pneg %p410
        $region82: #{encoder_forward.7} parent=79 // pred_check_branch
          %1665 = sbr.rel (%p1663) target = $region84
        $region83: #{encoder_forward.7} parent=79 // pred_region
          %s1667 = ssub.s32 128, 128
          %1668 = vsyncadd %s1654, %s1667
          %s1669 = sadd.s32 %s39, %s38
          %s1670 = smul.addr %s1669, 128
          %s1671 = scalar_lea.hbm %s15, %s1670
          %s1673 = sshll.u32 %s1657, 4
          %s1674 = int_to_ptr.vmem [resolvable:$true] %s1673
          %1676 = dma.vmem_to_hbm [thread:$0]  %s1674, 128, %s1671, %s1654
        $region84: #{encoder_forward.7} parent=79 // pred_fallthru
          _
        // Predicated region
        $region85: #{encoder_forward.7} parent=79 // pred_check
          %p1677 = pneg %p438
        $region86: #{encoder_forward.7} parent=79 // pred_check_branch
          %1679 = sbr.rel (%p1677) target = $region88
        $region87: #{encoder_forward.7} parent=79 // pred_region
          %s1681 = ssub.s32 512, 512
          %1682 = vsyncadd %s1659, %s1681
          %s1683 = smul.addr %s38, 4
          %s1684 = sadd.s32 %s39, %s1683
          %s1685 = smul.addr %s1684, 128
          %s1686 = scalar_lea.hbm %s16, %s1685
          %s1687 = sshll.u32 %s1662, 4
          %s1688 = int_to_ptr.vmem [resolvable:$true] %s1687
          %1693 = dma.vmem_to_hbm [thread:$0]  %s1688, 512, %s1686, %s1659, 128, 128, 8
        $region88: #{encoder_forward.7} parent=79 // pred_fallthru
          _
      $region80: #{encoder_forward.7} parent=5 // pred_fallthru
        _
      %p1694 = scmp.le.s32.totalorder 2, %s29
      // Predicated region
      $region89: #{encoder_forward.7} parent=5 // pred_check
        %p1695 = pneg %p1694
      $region90: #{encoder_forward.7} parent=5 // pred_check_branch
        %1697 = sbr.rel (%p1695) target = $region92
      $region91: #{encoder_forward.7} parent=5 // pred_region
        %s1698 = ssub.s32 %s29, 2
        // Predicated region
        $region93: #{encoder_forward.7} parent=91 // pred_check
          %p1699 = pneg %p416
        $region94: #{encoder_forward.7} parent=91 // pred_check_branch
          %1701 = sbr.rel (%p1699) target = $region96
        $region95: #{encoder_forward.7} parent=91 // pred_region
          %s1702 = sand.u32 %s401, 1
          %s1703 = scalar_lea.sflag [#allocation4], %s1702
          %s1704 = sand.u32 %s401, 1
          %s1705 = smul.addr %s1704, 8
          %s1706 = scalar_lea.vmem [#allocation3], %s1705
          %1707 = dma.done %s1703, 128
        $region96: #{encoder_forward.7} parent=91 // pred_fallthru
          _
        // Predicated region
        $region97: #{encoder_forward.7} parent=91 // pred_check
          %p1708 = pneg %p444
        $region98: #{encoder_forward.7} parent=91 // pred_check_branch
          %1710 = sbr.rel (%p1708) target = $region100
        $region99: #{encoder_forward.7} parent=91 // pred_region
          %s1711 = sand.u32 %s429, 1
          %s1712 = scalar_lea.sflag [#allocation6], %s1711
          %s1713 = sand.u32 %s429, 1
          %s1714 = smul.addr %s1713, 32
          %s1715 = scalar_lea.vmem [#allocation5], %s1714
          %1716 = dma.done %s1712, 512
        $region100: #{encoder_forward.7} parent=91 // pred_fallthru
          _
      $region92: #{encoder_forward.7} parent=5 // pred_fallthru
        _
    $region6: #{encoder_forward.7} parent=1 // loop_footer
      %s33 = sadd.s32 1, %s29
    $region7: #{encoder_forward.7} parent=1 // loop_footer_branch
      %28 = sbr.rel target = $region3
    $region8: #{encoder_forward.7} parent=1 // loop_exit
      _
    %1717 = vsyncpa [#allocation4], 1
    %s1718 = scalar_lea.sflag [#allocation4], 1
    %1719 = vsyncpa %s1718, 1
    %1720 = vsyncpa [#allocation6], 1
    %s1721 = scalar_lea.sflag [#allocation6], 1
    %1722 = vsyncpa %s1721, 1

</llo_original>
